<compile_context>
chip_gen: v7x
topology: tpu7x:2x2x1
jax: 0.10.0
libtpu: 0.0.40
codegen_flags: <defaults>
</compile_context>

<pallas_src>
import functools

import jax
import jax.numpy as jnp
from jax.experimental import pallas as pl
from jax.experimental.pallas import tpu as pltpu


def _round_up(a: int, b: int) -> int:
    return ((a + b - 1) // b) * b


# --------------------------------------------------------------------------- #
# Kernel: one batch tile of one LucasKAN layer.
# --------------------------------------------------------------------------- #
def _lucas_kan_layer_kernel(stats_ref, x_ref, wk_ref, gamma_ref, beta_ref,
                            o_ref, tmin_ref, tmax_ref,
                            *, degree: int, fout_real: int, k_pad: int):
    """stats_ref (SMEM, f32[2]) = [x_min, 2/(x_max - x_min)] over the FULL input.

    x_ref     : (TM, Fin)            f32 batch tile
    wk_ref    : (K_pad, Fout_pad)    bf16 fused weights, row k = term*Fin + f
                                     (term 0 = base, term d+1 = polynomial order d)
    gamma/beta: (1, Fout_pad)        f32 LayerNorm affine (zero-padded)
    o_ref     : (TM, Fout_pad)       f32 output tile (lane-dense)
    tmin/tmax : (8, 128)             per-tile min/max of real output cols (stats
                                     for the next layer; reduced in the wrapper)
    """
    x = x_ref[...].astype(jnp.float32)                      # (TM, Fin)
    x_min = stats_ref[0]
    scale = stats_ref[1]

    # ---- base branch + normalized input (f32 VPU; v5e has no bf16 VPU) ----
    silu_x = x * jax.nn.sigmoid(x)
    xn = (x - x_min) * scale - 1.0

    # ---- build the fused LHS slab [SiLU(x) | P_0 | ... | P_deg] ----
    pieces = [silu_x]
    p_prev = jnp.ones_like(xn)                              # P_0
    pieces.append(p_prev)
    if degree >= 1:
        p_cur = xn                                          # P_1
        pieces.append(p_cur)
        for n in range(1, degree):
            p_next = ((2.0 * n + 1.0) * xn * p_cur - float(n) * p_prev) \
                     * (1.0 / (n + 1.0))                    # constant reciprocal
            pieces.append(p_next)
            p_prev, p_cur = p_cur, p_next
    k_real = sum(p.shape[-1] for p in pieces)
    if k_pad > k_real:                                      # zero K-pad columns
        pieces.append(jnp.zeros((x.shape[0], k_pad - k_real), jnp.float32))
    slab = jnp.concatenate(pieces, axis=-1).astype(jnp.bfloat16)   # (TM, K_pad)

    # ---- single big-K MXU dot, f32 accumulation ----
    acc = jnp.dot(slab, wk_ref[...], preferred_element_type=jnp.float32)

    # ---- LayerNorm over the REAL Fout features (pad columns of acc are 0) ----
    fout_pad = acc.shape[-1]
    pad_cols = fout_pad - fout_real
    inv_f = 1.0 / float(fout_real)
    mean = jnp.sum(acc, axis=-1, keepdims=True) * inv_f
    centered = acc - mean
    var = (jnp.sum(centered * centered, axis=-1, keepdims=True)
           - float(pad_cols) * (mean * mean)) * inv_f
    y = centered * jax.lax.rsqrt(var + 1e-5)
    y = y * gamma_ref[...] + beta_ref[...]

    # ---- SiLU and lane-dense store ----
    out = y * jax.nn.sigmoid(y)
    o_ref[...] = out.astype(o_ref.dtype)

    # ---- per-tile min/max of the real output columns (stats for next layer).
    # Padded batch rows are edge-replicated real rows, so they cannot change them.
    col = jax.lax.broadcasted_iota(jnp.int32, out.shape, 1)
    valid = col < fout_real
    tmin = jnp.min(jnp.where(valid, out, jnp.inf))
    tmax = jnp.max(jnp.where(valid, out, -jnp.inf))
    tmin_ref[...] = jnp.broadcast_to(tmin, tmin_ref.shape)
    tmax_ref[...] = jnp.broadcast_to(tmax, tmax_ref.shape)


# --------------------------------------------------------------------------- #
# Tiling / VMEM budgeting (per-chip) and the pallas_call wrapper for one layer.
# --------------------------------------------------------------------------- #
def _vmem_capacity_bytes() -> int:
    try:
        info = pltpu.get_tpu_info()
        cap = getattr(info, "vmem_capacity_bytes", None)
        if cap:
            return int(cap)
    except Exception:
        pass
    return 64 * 1024 * 1024          # conservative (v7x-sized) fallback


def _choose_tile_and_vmem(n, fin, k_pad, fout_pad):
    """Pick a batch tile (multiple of 128 rows) and an explicit VMEM limit,
    sized from the actual chip's VMEM capacity (v5e/v6e 128 MiB, v7x 64 MiB)."""
    cap = _vmem_capacity_bytes()
    budget = int(cap * 0.70)

    def footprint(t):
        return (2 * t * fin * 4                    # x tile, double-buffered f32
                + 2 * t * fout_pad * 4             # out tile, double-buffered f32
                + 4 * 8 * 128 * 4                  # per-tile min/max outputs
                + 2 * k_pad * fout_pad * 2         # fused bf16 weights (2 buffers)
                + 2 * 2 * fout_pad * 4             # gamma/beta
                + t * k_pad * (4 + 2)              # f32 slab build + bf16 copy
                + t * fout_pad * 4                 # f32 accumulator
                + 6 * t * max(fin, fout_pad) * 4)  # other live f32 temporaries

    cap_rows = _round_up(max(n, 1), 128)
    tm = 128
    for cand in (256, 512, 1024, 2048):
        if cand <= cap_rows and footprint(cand) <= budget:
            tm = cand
    # Keep >= 2 grid steps when possible so ("parallel",) can shard over both
    # v7x TensorCores (harmless elsewhere: per-step overhead is ~0.35 us).
    while tm > 128 and _round_up(n, tm) // tm < 2:
        tm //= 2
    vmem_limit = int(min(max(2 * footprint(tm), 32 * 1024 * 1024), 0.9 * cap))
    return tm, vmem_limit


def lucas_kan_layer(x, stats, wk, gamma, beta, *, fout: int, degree: int):
    """x: (N, Fin) f32.  stats: f32[2] = [min, 2/(max-min)] of x.
    wk: (K_pad, Fout_pad) bf16 fused weights.  gamma/beta: (1, Fout_pad) f32.
    Returns (out (N, fout) f32, stats for the next layer)."""
    n, fin = x.shape
    k_pad, fout_pad = wk.shape

    tm, vmem_limit = _choose_tile_and_vmem(n, fin, k_pad, fout_pad)
    n_pad = _round_up(n, tm)
    if n_pad != n:
        # Edge padding: padded rows are copies of the last real row, so they give
        # finite outputs and cannot change the emitted per-tile min/max.
        x = jnp.pad(x, ((0, n_pad - n), (0, 0)), mode="edge")
    num_tiles = n_pad // tm

    kernel = functools.partial(_lucas_kan_layer_kernel,
                               degree=degree, fout_real=fout, k_pad=k_pad)

    out, tmin, tmax = pl.pallas_call(
        kernel,
        out_shape=(
            jax.ShapeDtypeStruct((n_pad, fout_pad), jnp.float32),
            jax.ShapeDtypeStruct((num_tiles * 8, 128), jnp.float32),
            jax.ShapeDtypeStruct((num_tiles * 8, 128), jnp.float32),
        ),
        grid=(num_tiles,),
        in_specs=[
            pl.BlockSpec(memory_space=pltpu.MemorySpace.SMEM),        # stats (2,)
            pl.BlockSpec((tm, fin), lambda i: (i, 0)),                # x tile
            pl.BlockSpec((k_pad, fout_pad), lambda i: (0, 0)),        # resident W
            pl.BlockSpec((1, fout_pad), lambda i: (0, 0)),            # gamma
            pl.BlockSpec((1, fout_pad), lambda i: (0, 0)),            # beta
        ],
        out_specs=(
            pl.BlockSpec((tm, fout_pad), lambda i: (i, 0)),           # output tile
            pl.BlockSpec((8, 128), lambda i: (i, 0)),                 # per-tile min
            pl.BlockSpec((8, 128), lambda i: (i, 0)),                 # per-tile max
        ),
        compiler_params=pltpu.CompilerParams(
            dimension_semantics=("parallel",),        # batch axis -> both v7x TCs
            vmem_limit_bytes=vmem_limit),
    )(stats, x.astype(jnp.float32), wk, gamma, beta)

    out = out[:n, :fout]
    nxt_min = jnp.min(tmin)
    nxt_max = jnp.max(tmax)
    # NOTE: nxt_max == nxt_min yields inf/NaN exactly like the PyTorch reference.
    next_stats = jnp.stack([nxt_min, 2.0 / (nxt_max - nxt_min)]).astype(jnp.float32)
    return out, next_stats


# --------------------------------------------------------------------------- #
# Parameter init (PyTorch layout) and one-time kernel-layout preprocessing.
# --------------------------------------------------------------------------- #
def init_lucas_kan_params(key, layers_hidden, degree):
    """Deterministic init (kaiming_uniform-like; LayerNorm weight=1, bias=0)."""
    params = []
    for fin, fout in zip(layers_hidden[:-1], layers_hidden[1:]):
        key, k1, k2 = jax.random.split(key, 3)
        b_bound = (3.0 / fin) ** 0.5
        p_bound = (3.0 / (fin * (degree + 1))) ** 0.5
        params.append(dict(
            base_w=jax.random.uniform(k1, (fout, fin), jnp.float32,
                                      -b_bound, b_bound),
            poly_w=jax.random.uniform(k2, (fout, fin * (degree + 1)), jnp.float32,
                                      -p_bound, p_bound),
            gamma=jnp.ones((fout,), jnp.float32),
            beta=jnp.zeros((fout,), jnp.float32),
        ))
    return params


def prepare_lucas_kan_params(raw_params, layers_hidden, degree):
    """One-time repack (hoisted off the forward path): fuse base + per-degree poly
    weights into a single bf16 (K_pad, Fout_pad) matrix whose row index is
    term*Fin + f (term 0 = base), with K padded to a multiple of 128 and Fout
    padded to a multiple of 128.  LN affine is zero-padded to Fout_pad."""
    prepared = []
    for p, (fin, fout) in zip(raw_params, zip(layers_hidden[:-1], layers_hidden[1:])):
        fout_pad = _round_up(fout, 128)
        base_w = p["base_w"]                              # (Fout, Fin)
        poly_w = p["poly_w"]                              # (Fout, Fin*(deg+1)), col = f*(deg+1)+d
        poly3 = poly_w.reshape(fout, fin, degree + 1).transpose(2, 1, 0)  # (deg+1, Fin, Fout)
        wcat = jnp.concatenate([base_w.T[None, :, :], poly3], axis=0)     # (deg+2, Fin, Fout)
        k_real = (degree + 2) * fin
        k_pad = _round_up(k_real, 128)
        wk = wcat.reshape(k_real, fout)                   # row = term*Fin + f
        wk = jnp.pad(wk, ((0, k_pad - k_real), (0, fout_pad - fout)))
        prepared.append(dict(
            wk=wk.astype(jnp.bfloat16),
            gamma=jnp.pad(p["gamma"], (0, fout_pad - fout)).reshape(1, fout_pad)
                      .astype(jnp.float32),
            beta=jnp.pad(p["beta"], (0, fout_pad - fout)).reshape(1, fout_pad)
                      .astype(jnp.float32),
        ))
    return prepared


def lucas_kan_forward(x, prepared_params, layers_hidden, degree):
    x = x.reshape(-1, layers_hidden[0]).astype(jnp.float32)
    # Stats for the first layer only: min/max over the raw network input (XLA fuses
    # the two reductions into a single pass).  Every subsequent layer's stats come
    # from the per-tile min/max emitted by the previous layer's kernel, so each
    # intermediate activation is read from HBM exactly once.
    x_min = jnp.min(x)
    x_max = jnp.max(x)
    stats = jnp.stack([x_min, 2.0 / (x_max - x_min)]).astype(jnp.float32)
    for p, fout in zip(prepared_params, layers_hidden[1:]):
        x, stats = lucas_kan_layer(x, stats, p["wk"], p["gamma"], p["beta"],
                                   fout=fout, degree=degree)
    return x


# ------------- pure-JAX reference (mirrors PyTorch semantics, f32) ------------ #
def _ref_layer(x, base_w, poly_w, gamma, beta, degree):
    silu = lambda t: t * jax.nn.sigmoid(t)
    x = x.reshape(-1, base_w.shape[1])
    base_out = silu(x) @ base_w.T
    xn = 2.0 * (x - x.min()) / (x.max() - x.min()) - 1.0
    polys = [jnp.ones_like(xn)]
    if degree >= 1:
        polys.append(xn)
    for n in range(1, degree):
        polys.append(((2.0 * n + 1.0) * xn * polys[-1] - n * polys[-2]) / (n + 1.0))
    basis = jnp.stack(polys, axis=-1).reshape(x.shape[0], -1)   # col = f*(deg+1)+d
    y = base_out + basis @ poly_w.T
    mean = y.mean(-1, keepdims=True)
    var = ((y - mean) ** 2).mean(-1, keepdims=True)
    y = (y - mean) / jnp.sqrt(var + 1e-5) * gamma + beta
    return silu(y)


def _ref_forward(x, raw_params, layers_hidden, degree):
    x = x.reshape(-1, layers_hidden[0]).astype(jnp.float32)
    for p in raw_params:
        x = _ref_layer(x, p["base_w"], p["poly_w"], p["gamma"], p["beta"], degree)
    return x


if __name__ == "__main__":
    layers_hidden = [32, 64, 16]
    degree = 3
    batch = 8

    key = jax.random.PRNGKey(0)
    key, kx = jax.random.split(key)
    x = jax.random.normal(kx, (batch, layers_hidden[0]), jnp.float32)
    raw_params = init_lucas_kan_params(key, layers_hidden, degree)
    prepared = prepare_lucas_kan_params(raw_params, layers_hidden, degree)

    fwd = jax.jit(lambda xx, pp: lucas_kan_forward(xx, pp, layers_hidden, degree))
    out = jax.block_until_ready(fwd(x, prepared))

    ref = _ref_forward(x, raw_params, layers_hidden, degree)
    assert out.shape == (batch, layers_hidden[-1])
    # bf16 MXU inputs with f32 accumulation -> slightly looser tolerance than f32.
    max_err = jnp.max(jnp.abs(out - ref))
    assert jnp.allclose(out, ref, rtol=5e-2, atol=5e-2), f"max abs err = {max_err}"

    print("KERNEL_OK")
</pallas_src>

<mosaic_0001>
module attributes {stable_mosaic.version = 11 : i64} {
  func.func @_lucas_kan_layer_kernel(%arg0: i32, %arg1: memref<2xf32, #tpu.memory_space<smem>>, %arg2: memref<128x32xf32, #tpu.memory_space<vmem>>, %arg3: memref<256x128xbf16, #tpu.memory_space<vmem>>, %arg4: memref<1x128xf32, #tpu.memory_space<vmem>>, %arg5: memref<1x128xf32, #tpu.memory_space<vmem>>, %arg6: memref<128x128xf32, #tpu.memory_space<vmem>>, %arg7: memref<8x128xf32, #tpu.memory_space<vmem>>, %arg8: memref<8x128xf32, #tpu.memory_space<vmem>>) attributes {dimension_semantics = [#tpu.dimension_semantics<parallel>], iteration_bounds = array<i64: 1>, scalar_prefetch = 0 : i64, scratch_operands = 0 : i64, tpu.core_type = #tpu.core_type<tc>, window_params = [{transform_indices = @transform_0, window_bounds = array<i64: 2>}, {transform_indices = @transform_1, window_bounds = array<i64: 128, 32>}, {pipeline_mode = #tpu.pipeline_mode<synchronous>, transform_indices = @transform_2, window_bounds = array<i64: 256, 128>}, {pipeline_mode = #tpu.pipeline_mode<synchronous>, transform_indices = @transform_3, window_bounds = array<i64: 1, 128>}, {pipeline_mode = #tpu.pipeline_mode<synchronous>, transform_indices = @transform_4, window_bounds = array<i64: 1, 128>}, {transform_indices = @transform_5, window_bounds = array<i64: 128, 128>}, {transform_indices = @transform_6, window_bounds = array<i64: 8, 128>}, {transform_indices = @transform_7, window_bounds = array<i64: 8, 128>}]} {
    %c0 = arith.constant 0 : index
    %c0_0 = arith.constant 0 : index
    %0 = vector.load %arg2[%c0, %c0_0] : memref<128x32xf32, #tpu.memory_space<vmem>>, vector<128x32xf32>
    %c0_1 = arith.constant 0 : index
    %1 = memref.load %arg1[%c0_1] : memref<2xf32, #tpu.memory_space<smem>>
    %c1 = arith.constant 1 : index
    %2 = memref.load %arg1[%c1] : memref<2xf32, #tpu.memory_space<smem>>
    %3 = arith.negf %0 : vector<128x32xf32>
    %4 = math.exp %3 : vector<128x32xf32>
    %cst = arith.constant 1.000000e+00 : f32
    %5 = vector.broadcast %cst : f32 to vector<128x32xf32>
    %6 = arith.addf %5, %4 : vector<128x32xf32>
    %7 = arith.divf %5, %6 : vector<128x32xf32>
    %8 = arith.mulf %0, %7 : vector<128x32xf32>
    %9 = vector.broadcast %1 : f32 to vector<128x32xf32>
    %10 = arith.subf %0, %9 : vector<128x32xf32>
    %11 = vector.broadcast %2 : f32 to vector<128x32xf32>
    %12 = arith.mulf %10, %11 : vector<128x32xf32>
    %cst_2 = arith.constant 1.000000e+00 : f32
    %13 = vector.broadcast %cst_2 : f32 to vector<128x32xf32>
    %14 = arith.subf %12, %13 : vector<128x32xf32>
    %cst_3 = arith.constant 1.000000e+00 : f32
    %15 = vector.broadcast %cst_3 : f32 to vector<128x32xf32>
    %cst_4 = arith.constant 3.000000e+00 : f32
    %16 = vector.broadcast %cst_4 : f32 to vector<128x32xf32>
    %17 = arith.mulf %16, %14 : vector<128x32xf32>
    %18 = arith.mulf %17, %14 : vector<128x32xf32>
    %cst_5 = arith.constant 1.000000e+00 : f32
    %19 = vector.broadcast %cst_5 : f32 to vector<128x32xf32>
    %20 = arith.mulf %19, %15 : vector<128x32xf32>
    %21 = arith.subf %18, %20 : vector<128x32xf32>
    %cst_6 = arith.constant 5.000000e-01 : f32
    %22 = vector.broadcast %cst_6 : f32 to vector<128x32xf32>
    %23 = arith.mulf %21, %22 : vector<128x32xf32>
    %cst_7 = arith.constant 5.000000e+00 : f32
    %24 = vector.broadcast %cst_7 : f32 to vector<128x32xf32>
    %25 = arith.mulf %24, %14 : vector<128x32xf32>
    %26 = arith.mulf %25, %23 : vector<128x32xf32>
    %cst_8 = arith.constant 2.000000e+00 : f32
    %27 = vector.broadcast %cst_8 : f32 to vector<128x32xf32>
    %28 = arith.mulf %27, %14 : vector<128x32xf32>
    %29 = arith.subf %26, %28 : vector<128x32xf32>
    %cst_9 = arith.constant 0.333333343 : f32
    %30 = vector.broadcast %cst_9 : f32 to vector<128x32xf32>
    %31 = arith.mulf %29, %30 : vector<128x32xf32>
    %cst_10 = arith.constant 0.000000e+00 : f32
    %32 = vector.broadcast %cst_10 : f32 to vector<128x96xf32>
    %33 = tpu.concatenate %8, %15, %14, %23, %31, %32 in 1 : vector<128x32xf32>, vector<128x32xf32>, vector<128x32xf32>, vector<128x32xf32>, vector<128x32xf32>, vector<128x96xf32> -> vector<128x256xf32>
    %34 = arith.truncf %33 : vector<128x256xf32> to vector<128x256xbf16>
    %c0_11 = arith.constant 0 : index
    %c0_12 = arith.constant 0 : index
    %35 = vector.load %arg3[%c0_11, %c0_12] : memref<256x128xbf16, #tpu.memory_space<vmem>>, vector<256x128xbf16>
    %cst_13 = arith.constant dense<0.000000e+00> : vector<128x128xf32>
    %36 = tpu.matmul %34, %35, %cst_13 {dimension_numbers = #tpu.dot_dimension_numbers<[1], [0], [0], [1], [0, 0, 1, 1], [], []>} : vector<128x256xbf16>, vector<256x128xbf16>, vector<128x128xf32> -> vector<128x128xf32>
    %cst_14 = arith.constant dense<0.000000e+00> : vector<128xf32>
    %37 = vector.multi_reduction <add>, %36, %cst_14 [1] : vector<128x128xf32> to vector<128xf32>
    %38 = vector.shape_cast %37 : vector<128xf32> to vector<128x1xf32>
    %cst_15 = arith.constant 1.562500e-02 : f32
    %39 = vector.broadcast %cst_15 : f32 to vector<128x1xf32>
    %40 = arith.mulf %38, %39 : vector<128x1xf32>
    %41 = vector.broadcast %40 : vector<128x1xf32> to vector<128x128xf32>
    %42 = arith.subf %36, %41 : vector<128x128xf32>
    %43 = arith.mulf %42, %42 : vector<128x128xf32>
    %cst_16 = arith.constant dense<0.000000e+00> : vector<128xf32>
    %44 = vector.multi_reduction <add>, %43, %cst_16 [1] : vector<128x128xf32> to vector<128xf32>
    %45 = vector.shape_cast %44 : vector<128xf32> to vector<128x1xf32>
    %46 = arith.mulf %40, %40 : vector<128x1xf32>
    %cst_17 = arith.constant 6.400000e+01 : f32
    %47 = vector.broadcast %cst_17 : f32 to vector<128x1xf32>
    %48 = arith.mulf %47, %46 : vector<128x1xf32>
    %49 = arith.subf %45, %48 : vector<128x1xf32>
    %cst_18 = arith.constant 1.562500e-02 : f32
    %50 = vector.broadcast %cst_18 : f32 to vector<128x1xf32>
    %51 = arith.mulf %49, %50 : vector<128x1xf32>
    %cst_19 = arith.constant 9.99999974E-6 : f32
    %52 = vector.broadcast %cst_19 : f32 to vector<128x1xf32>
    %53 = arith.addf %51, %52 : vector<128x1xf32>
    %54 = math.rsqrt %53 : vector<128x1xf32>
    %55 = vector.broadcast %54 : vector<128x1xf32> to vector<128x128xf32>
    %56 = arith.mulf %42, %55 : vector<128x128xf32>
    %c0_20 = arith.constant 0 : index
    %c0_21 = arith.constant 0 : index
    %57 = vector.load %arg4[%c0_20, %c0_21] : memref<1x128xf32, #tpu.memory_space<vmem>>, vector<1x128xf32>
    %58 = vector.broadcast %57 : vector<1x128xf32> to vector<128x128xf32>
    %59 = arith.mulf %56, %58 : vector<128x128xf32>
    %c0_22 = arith.constant 0 : index
    %c0_23 = arith.constant 0 : index
    %60 = vector.load %arg5[%c0_22, %c0_23] : memref<1x128xf32, #tpu.memory_space<vmem>>, vector<1x128xf32>
    %61 = vector.broadcast %60 : vector<1x128xf32> to vector<128x128xf32>
    %62 = arith.addf %59, %61 : vector<128x128xf32>
    %63 = arith.negf %62 : vector<128x128xf32>
    %64 = math.exp %63 : vector<128x128xf32>
    %cst_24 = arith.constant 1.000000e+00 : f32
    %65 = vector.broadcast %cst_24 : f32 to vector<128x128xf32>
    %66 = arith.addf %65, %64 : vector<128x128xf32>
    %67 = arith.divf %65, %66 : vector<128x128xf32>
    %68 = arith.mulf %62, %67 : vector<128x128xf32>
    %c0_25 = arith.constant 0 : index
    %c0_26 = arith.constant 0 : index
    %69 = vector.load %arg6[%c0_25, %c0_26] : memref<128x128xf32, #tpu.memory_space<vmem>>, vector<128x128xf32>
    tpu.vector_store %arg6[%c0_25, %c0_26], %68 {strides = array<i32>} : memref<128x128xf32, #tpu.memory_space<vmem>>, vector<128x128xf32>,
    %70 = tpu.iota {dimensions = array<i32: 1>} : vector<128x128xi32>
    %c64_i32 = arith.constant 64 : i32
    %71 = vector.broadcast %c64_i32 : i32 to vector<128x128xi32>
    %72 = arith.cmpi slt, %70, %71 : vector<128x128xi32>
    %cst_27 = arith.constant 0x7F800000 : f32
    %73 = vector.broadcast %cst_27 : f32 to vector<128x128xf32>
    %74 = arith.select %72, %68, %73 : vector<128x128xi1>, vector<128x128xf32>
    %75 = vector.shape_cast %74 : vector<128x128xf32> to vector<1x128x128xf32>
    %cst_28 = arith.constant dense<0x7F800000> : vector<1xf32>
    %76 = vector.multi_reduction <minimumf>, %75, %cst_28 [1, 2] : vector<1x128x128xf32> to vector<1xf32>
    %77 = vector.shape_cast %76 : vector<1xf32> to vector<1x1x1xf32>
    %78 = vector.extract %77[0, 0, 0] : f32 from vector<1x1x1xf32>
    %cst_29 = arith.constant 0xFF800000 : f32
    %79 = vector.broadcast %cst_29 : f32 to vector<128x128xf32>
    %80 = arith.select %72, %68, %79 : vector<128x128xi1>, vector<128x128xf32>
    %81 = vector.shape_cast %80 : vector<128x128xf32> to vector<1x128x128xf32>
    %cst_30 = arith.constant dense<0xFF800000> : vector<1xf32>
    %82 = vector.multi_reduction <maximumf>, %81, %cst_30 [1, 2] : vector<1x128x128xf32> to vector<1xf32>
    %83 = vector.shape_cast %82 : vector<1xf32> to vector<1x1x1xf32>
    %84 = vector.extract %83[0, 0, 0] : f32 from vector<1x1x1xf32>
    %85 = vector.broadcast %78 : f32 to vector<8x128xf32>
    %c0_31 = arith.constant 0 : index
    %c0_32 = arith.constant 0 : index
    %86 = vector.load %arg7[%c0_31, %c0_32] : memref<8x128xf32, #tpu.memory_space<vmem>>, vector<8x128xf32>
    tpu.vector_store %arg7[%c0_31, %c0_32], %85 {strides = array<i32>} : memref<8x128xf32, #tpu.memory_space<vmem>>, vector<8x128xf32>,
    %87 = vector.broadcast %84 : f32 to vector<8x128xf32>
    %c0_33 = arith.constant 0 : index
    %c0_34 = arith.constant 0 : index
    %88 = vector.load %arg8[%c0_33, %c0_34] : memref<8x128xf32, #tpu.memory_space<vmem>>, vector<8x128xf32>
    tpu.vector_store %arg8[%c0_33, %c0_34], %87 {strides = array<i32>} : memref<8x128xf32, #tpu.memory_space<vmem>>, vector<8x128xf32>,
    return
  }
  func.func @transform_0(%arg0: i32) -> i32 {
    %c0_i32 = arith.constant 0 : i32
    %c0_i32_0 = arith.constant 0 : i32
    return %c0_i32 : i32
  }
  func.func @transform_1(%arg0: i32) -> (i32, i32) {
    %c0_i32 = arith.constant 0 : i32
    %c0_i32_0 = arith.constant 0 : i32
    return %arg0, %c0_i32 : i32, i32
  }
  func.func @transform_2(%arg0: i32) -> (i32, i32) {
    %c0_i32 = arith.constant 0 : i32
    %c0_i32_0 = arith.constant 0 : i32
    %c0_i32_1 = arith.constant 0 : i32
    return %c0_i32, %c0_i32_0 : i32, i32
  }
  func.func @transform_3(%arg0: i32) -> (i32, i32) {
    %c0_i32 = arith.constant 0 : i32
    %c0_i32_0 = arith.constant 0 : i32
    %c0_i32_1 = arith.constant 0 : i32
    return %c0_i32, %c0_i32_0 : i32, i32
  }
  func.func @transform_4(%arg0: i32) -> (i32, i32) {
    %c0_i32 = arith.constant 0 : i32
    %c0_i32_0 = arith.constant 0 : i32
    %c0_i32_1 = arith.constant 0 : i32
    return %c0_i32, %c0_i32_0 : i32, i32
  }
  func.func @transform_5(%arg0: i32) -> (i32, i32) {
    %c0_i32 = arith.constant 0 : i32
    %c0_i32_0 = arith.constant 0 : i32
    return %arg0, %c0_i32 : i32, i32
  }
  func.func @transform_6(%arg0: i32) -> (i32, i32) {
    %c0_i32 = arith.constant 0 : i32
    %c0_i32_0 = arith.constant 0 : i32
    return %arg0, %c0_i32 : i32, i32
  }
  func.func @transform_7(%arg0: i32) -> (i32, i32) {
    %c0_i32 = arith.constant 0 : i32
    %c0_i32_0 = arith.constant 0 : i32
    return %arg0, %c0_i32 : i32, i32
  }
}

module attributes {stable_mosaic.version = 11 : i64} {
  func.func @_lucas_kan_layer_kernel(%arg0: i32, %arg1: memref<2xf32, #tpu.memory_space<smem>>, %arg2: memref<128x64xf32, #tpu.memory_space<vmem>>, %arg3: memref<384x128xbf16, #tpu.memory_space<vmem>>, %arg4: memref<1x128xf32, #tpu.memory_space<vmem>>, %arg5: memref<1x128xf32, #tpu.memory_space<vmem>>, %arg6: memref<128x128xf32, #tpu.memory_space<vmem>>, %arg7: memref<8x128xf32, #tpu.memory_space<vmem>>, %arg8: memref<8x128xf32, #tpu.memory_space<vmem>>) attributes {dimension_semantics = [#tpu.dimension_semantics<parallel>], iteration_bounds = array<i64: 1>, scalar_prefetch = 0 : i64, scratch_operands = 0 : i64, tpu.core_type = #tpu.core_type<tc>, window_params = [{transform_indices = @transform_0, window_bounds = array<i64: 2>}, {transform_indices = @transform_1, window_bounds = array<i64: 128, 64>}, {pipeline_mode = #tpu.pipeline_mode<synchronous>, transform_indices = @transform_2, window_bounds = array<i64: 384, 128>}, {pipeline_mode = #tpu.pipeline_mode<synchronous>, transform_indices = @transform_3, window_bounds = array<i64: 1, 128>}, {pipeline_mode = #tpu.pipeline_mode<synchronous>, transform_indices = @transform_4, window_bounds = array<i64: 1, 128>}, {transform_indices = @transform_5, window_bounds = array<i64: 128, 128>}, {transform_indices = @transform_6, window_bounds = array<i64: 8, 128>}, {transform_indices = @transform_7, window_bounds = array<i64: 8, 128>}]} {
    %c0 = arith.constant 0 : index
    %c0_0 = arith.constant 0 : index
    %0 = vector.load %arg2[%c0, %c0_0] : memref<128x64xf32, #tpu.memory_space<vmem>>, vector<128x64xf32>
    %c0_1 = arith.constant 0 : index
    %1 = memref.load %arg1[%c0_1] : memref<2xf32, #tpu.memory_space<smem>>
    %c1 = arith.constant 1 : index
    %2 = memref.load %arg1[%c1] : memref<2xf32, #tpu.memory_space<smem>>
    %3 = arith.negf %0 : vector<128x64xf32>
    %4 = math.exp %3 : vector<128x64xf32>
    %cst = arith.constant 1.000000e+00 : f32
    %5 = vector.broadcast %cst : f32 to vector<128x64xf32>
    %6 = arith.addf %5, %4 : vector<128x64xf32>
    %7 = arith.divf %5, %6 : vector<128x64xf32>
    %8 = arith.mulf %0, %7 : vector<128x64xf32>
    %9 = vector.broadcast %1 : f32 to vector<128x64xf32>
    %10 = arith.subf %0, %9 : vector<128x64xf32>
    %11 = vector.broadcast %2 : f32 to vector<128x64xf32>
    %12 = arith.mulf %10, %11 : vector<128x64xf32>
    %cst_2 = arith.constant 1.000000e+00 : f32
    %13 = vector.broadcast %cst_2 : f32 to vector<128x64xf32>
    %14 = arith.subf %12, %13 : vector<128x64xf32>
    %cst_3 = arith.constant 1.000000e+00 : f32
    %15 = vector.broadcast %cst_3 : f32 to vector<128x64xf32>
    %cst_4 = arith.constant 3.000000e+00 : f32
    %16 = vector.broadcast %cst_4 : f32 to vector<128x64xf32>
    %17 = arith.mulf %16, %14 : vector<128x64xf32>
    %18 = arith.mulf %17, %14 : vector<128x64xf32>
    %cst_5 = arith.constant 1.000000e+00 : f32
    %19 = vector.broadcast %cst_5 : f32 to vector<128x64xf32>
    %20 = arith.mulf %19, %15 : vector<128x64xf32>
    %21 = arith.subf %18, %20 : vector<128x64xf32>
    %cst_6 = arith.constant 5.000000e-01 : f32
    %22 = vector.broadcast %cst_6 : f32 to vector<128x64xf32>
    %23 = arith.mulf %21, %22 : vector<128x64xf32>
    %cst_7 = arith.constant 5.000000e+00 : f32
    %24 = vector.broadcast %cst_7 : f32 to vector<128x64xf32>
    %25 = arith.mulf %24, %14 : vector<128x64xf32>
    %26 = arith.mulf %25, %23 : vector<128x64xf32>
    %cst_8 = arith.constant 2.000000e+00 : f32
    %27 = vector.broadcast %cst_8 : f32 to vector<128x64xf32>
    %28 = arith.mulf %27, %14 : vector<128x64xf32>
    %29 = arith.subf %26, %28 : vector<128x64xf32>
    %cst_9 = arith.constant 0.333333343 : f32
    %30 = vector.broadcast %cst_9 : f32 to vector<128x64xf32>
    %31 = arith.mulf %29, %30 : vector<128x64xf32>
    %cst_10 = arith.constant 0.000000e+00 : f32
    %32 = vector.broadcast %cst_10 : f32 to vector<128x64xf32>
    %33 = tpu.concatenate %8, %15, %14, %23, %31, %32 in 1 : vector<128x64xf32>, vector<128x64xf32>, vector<128x64xf32>, vector<128x64xf32>, vector<128x64xf32>, vector<128x64xf32> -> vector<128x384xf32>
    %34 = arith.truncf %33 : vector<128x384xf32> to vector<128x384xbf16>
    %c0_11 = arith.constant 0 : index
    %c0_12 = arith.constant 0 : index
    %35 = vector.load %arg3[%c0_11, %c0_12] : memref<384x128xbf16, #tpu.memory_space<vmem>>, vector<384x128xbf16>
    %cst_13 = arith.constant dense<0.000000e+00> : vector<128x128xf32>
    %36 = tpu.matmul %34, %35, %cst_13 {dimension_numbers = #tpu.dot_dimension_numbers<[1], [0], [0], [1], [0, 0, 1, 1], [], []>} : vector<128x384xbf16>, vector<384x128xbf16>, vector<128x128xf32> -> vector<128x128xf32>
    %cst_14 = arith.constant dense<0.000000e+00> : vector<128xf32>
    %37 = vector.multi_reduction <add>, %36, %cst_14 [1] : vector<128x128xf32> to vector<128xf32>
    %38 = vector.shape_cast %37 : vector<128xf32> to vector<128x1xf32>
    %cst_15 = arith.constant 6.250000e-02 : f32
    %39 = vector.broadcast %cst_15 : f32 to vector<128x1xf32>
    %40 = arith.mulf %38, %39 : vector<128x1xf32>
    %41 = vector.broadcast %40 : vector<128x1xf32> to vector<128x128xf32>
    %42 = arith.subf %36, %41 : vector<128x128xf32>
    %43 = arith.mulf %42, %42 : vector<128x128xf32>
    %cst_16 = arith.constant dense<0.000000e+00> : vector<128xf32>
    %44 = vector.multi_reduction <add>, %43, %cst_16 [1] : vector<128x128xf32> to vector<128xf32>
    %45 = vector.shape_cast %44 : vector<128xf32> to vector<128x1xf32>
    %46 = arith.mulf %40, %40 : vector<128x1xf32>
    %cst_17 = arith.constant 1.120000e+02 : f32
    %47 = vector.broadcast %cst_17 : f32 to vector<128x1xf32>
    %48 = arith.mulf %47, %46 : vector<128x1xf32>
    %49 = arith.subf %45, %48 : vector<128x1xf32>
    %cst_18 = arith.constant 6.250000e-02 : f32
    %50 = vector.broadcast %cst_18 : f32 to vector<128x1xf32>
    %51 = arith.mulf %49, %50 : vector<128x1xf32>
    %cst_19 = arith.constant 9.99999974E-6 : f32
    %52 = vector.broadcast %cst_19 : f32 to vector<128x1xf32>
    %53 = arith.addf %51, %52 : vector<128x1xf32>
    %54 = math.rsqrt %53 : vector<128x1xf32>
    %55 = vector.broadcast %54 : vector<128x1xf32> to vector<128x128xf32>
    %56 = arith.mulf %42, %55 : vector<128x128xf32>
    %c0_20 = arith.constant 0 : index
    %c0_21 = arith.constant 0 : index
    %57 = vector.load %arg4[%c0_20, %c0_21] : memref<1x128xf32, #tpu.memory_space<vmem>>, vector<1x128xf32>
    %58 = vector.broadcast %57 : vector<1x128xf32> to vector<128x128xf32>
    %59 = arith.mulf %56, %58 : vector<128x128xf32>
    %c0_22 = arith.constant 0 : index
    %c0_23 = arith.constant 0 : index
    %60 = vector.load %arg5[%c0_22, %c0_23] : memref<1x128xf32, #tpu.memory_space<vmem>>, vector<1x128xf32>
    %61 = vector.broadcast %60 : vector<1x128xf32> to vector<128x128xf32>
    %62 = arith.addf %59, %61 : vector<128x128xf32>
    %63 = arith.negf %62 : vector<128x128xf32>
    %64 = math.exp %63 : vector<128x128xf32>
    %cst_24 = arith.constant 1.000000e+00 : f32
    %65 = vector.broadcast %cst_24 : f32 to vector<128x128xf32>
    %66 = arith.addf %65, %64 : vector<128x128xf32>
    %67 = arith.divf %65, %66 : vector<128x128xf32>
    %68 = arith.mulf %62, %67 : vector<128x128xf32>
    %c0_25 = arith.constant 0 : index
    %c0_26 = arith.constant 0 : index
    %69 = vector.load %arg6[%c0_25, %c0_26] : memref<128x128xf32, #tpu.memory_space<vmem>>, vector<128x128xf32>
    tpu.vector_store %arg6[%c0_25, %c0_26], %68 {strides = array<i32>} : memref<128x128xf32, #tpu.memory_space<vmem>>, vector<128x128xf32>,
    %70 = tpu.iota {dimensions = array<i32: 1>} : vector<128x128xi32>
    %c16_i32 = arith.constant 16 : i32
    %71 = vector.broadcast %c16_i32 : i32 to vector<128x128xi32>
    %72 = arith.cmpi slt, %70, %71 : vector<128x128xi32>
    %cst_27 = arith.constant 0x7F800000 : f32
    %73 = vector.broadcast %cst_27 : f32 to vector<128x128xf32>
    %74 = arith.select %72, %68, %73 : vector<128x128xi1>, vector<128x128xf32>
    %75 = vector.shape_cast %74 : vector<128x128xf32> to vector<1x128x128xf32>
    %cst_28 = arith.constant dense<0x7F800000> : vector<1xf32>
    %76 = vector.multi_reduction <minimumf>, %75, %cst_28 [1, 2] : vector<1x128x128xf32> to vector<1xf32>
    %77 = vector.shape_cast %76 : vector<1xf32> to vector<1x1x1xf32>
    %78 = vector.extract %77[0, 0, 0] : f32 from vector<1x1x1xf32>
    %cst_29 = arith.constant 0xFF800000 : f32
    %79 = vector.broadcast %cst_29 : f32 to vector<128x128xf32>
    %80 = arith.select %72, %68, %79 : vector<128x128xi1>, vector<128x128xf32>
    %81 = vector.shape_cast %80 : vector<128x128xf32> to vector<1x128x128xf32>
    %cst_30 = arith.constant dense<0xFF800000> : vector<1xf32>
    %82 = vector.multi_reduction <maximumf>, %81, %cst_30 [1, 2] : vector<1x128x128xf32> to vector<1xf32>
    %83 = vector.shape_cast %82 : vector<1xf32> to vector<1x1x1xf32>
    %84 = vector.extract %83[0, 0, 0] : f32 from vector<1x1x1xf32>
    %85 = vector.broadcast %78 : f32 to vector<8x128xf32>
    %c0_31 = arith.constant 0 : index
    %c0_32 = arith.constant 0 : index
    %86 = vector.load %arg7[%c0_31, %c0_32] : memref<8x128xf32, #tpu.memory_space<vmem>>, vector<8x128xf32>
    tpu.vector_store %arg7[%c0_31, %c0_32], %85 {strides = array<i32>} : memref<8x128xf32, #tpu.memory_space<vmem>>, vector<8x128xf32>,
    %87 = vector.broadcast %84 : f32 to vector<8x128xf32>
    %c0_33 = arith.constant 0 : index
    %c0_34 = arith.constant 0 : index
    %88 = vector.load %arg8[%c0_33, %c0_34] : memref<8x128xf32, #tpu.memory_space<vmem>>, vector<8x128xf32>
    tpu.vector_store %arg8[%c0_33, %c0_34], %87 {strides = array<i32>} : memref<8x128xf32, #tpu.memory_space<vmem>>, vector<8x128xf32>,
    return
  }
  func.func @transform_0(%arg0: i32) -> i32 {
    %c0_i32 = arith.constant 0 : i32
    %c0_i32_0 = arith.constant 0 : i32
    return %c0_i32 : i32
  }
  func.func @transform_1(%arg0: i32) -> (i32, i32) {
    %c0_i32 = arith.constant 0 : i32
    %c0_i32_0 = arith.constant 0 : i32
    return %arg0, %c0_i32 : i32, i32
  }
  func.func @transform_2(%arg0: i32) -> (i32, i32) {
    %c0_i32 = arith.constant 0 : i32
    %c0_i32_0 = arith.constant 0 : i32
    %c0_i32_1 = arith.constant 0 : i32
    return %c0_i32, %c0_i32_0 : i32, i32
  }
  func.func @transform_3(%arg0: i32) -> (i32, i32) {
    %c0_i32 = arith.constant 0 : i32
    %c0_i32_0 = arith.constant 0 : i32
    %c0_i32_1 = arith.constant 0 : i32
    return %c0_i32, %c0_i32_0 : i32, i32
  }
  func.func @transform_4(%arg0: i32) -> (i32, i32) {
    %c0_i32 = arith.constant 0 : i32
    %c0_i32_0 = arith.constant 0 : i32
    %c0_i32_1 = arith.constant 0 : i32
    return %c0_i32, %c0_i32_0 : i32, i32
  }
  func.func @transform_5(%arg0: i32) -> (i32, i32) {
    %c0_i32 = arith.constant 0 : i32
    %c0_i32_0 = arith.constant 0 : i32
    return %arg0, %c0_i32 : i32, i32
  }
  func.func @transform_6(%arg0: i32) -> (i32, i32) {
    %c0_i32 = arith.constant 0 : i32
    %c0_i32_0 = arith.constant 0 : i32
    return %arg0, %c0_i32 : i32, i32
  }
  func.func @transform_7(%arg0: i32) -> (i32, i32) {
    %c0_i32 = arith.constant 0 : i32
    %c0_i32_0 = arith.constant 0 : i32
    return %arg0, %c0_i32 : i32, i32
  }
}

</mosaic_0001>

<llo_original>
// kernel: _lambda_.2
$region0: #{_lambda_.2}
  #allocation0 [shape = 'u32[]', space=smem, size = 0x4, offset = 0x4, fixed_abs, tag = 'smem constant byte address 0x4 - core index']
  #allocation1 [shape = 'u32[144,128]{1,0:T(1,128)}', space=vmem, size = 0x12000, scoped, tag = 'internal scratch']
  %s0 = inlined_call_operand.vmem [shape: f32[2], index: 0, kind: input, shape index: {}]
  %s1 = inlined_call_operand.vmem [shape: f32[128,32], index: 1, kind: input, shape index: {}]
  %s2 = inlined_call_operand.vmem [shape: bf16[256,128], index: 2, kind: input, shape index: {}]
  %s3 = inlined_call_operand.vmem [shape: f32[1,128], index: 3, kind: input, shape index: {}]
  %s4 = inlined_call_operand.vmem [shape: f32[1,128], index: 4, kind: input, shape index: {}]
  %s5 = inlined_call_operand.vmem [shape: f32[128,128], index: 5, kind: output, shape index: {0}]
  %s6 = inlined_call_operand.vmem [shape: f32[8,128], index: 6, kind: output, shape index: {1}]
  %s7 = inlined_call_operand.vmem [shape: f32[8,128], index: 7, kind: output, shape index: {2}]
  %8 = xla_tuple %s5, %s6, %s7
  %s9 = sld [smem:[#allocation0]]
  $region50: #{_lambda_.2} parent=0
    _
  %s11 = ssub.s32 1, %s9
  %s12 = scalar_select 0, %s11, %s9
  $region1: #{_lambda_.2} parent=0
    #allocation2 [shape = 'u8[512]{0}', space=smem, size = 0x200, scoped, tag = 'input window, operand 0, single buffered']
    #allocation3 [shape = 's32[1]{0}', space=sflag, size = 0x4, scoped, tag = 'scoped memory for _lambda_.2']
    %13 = vsyncpa [#allocation3], 0
    // Predicated region
    $region2: #{_lambda_.2} parent=1 // pred_check
      _
    $region3: #{_lambda_.2} parent=1 // pred_check_branch
      %15 = sbr.rel (0) target = $region5
    $region4: #{_lambda_.2} parent=1 // pred_region
      %s17 = ssub.s32 16, 16
      %18 = vsyncadd [#allocation3], %s17
      %s20 = sshll.u32 %s0, 4
      %s21 = int_to_ptr.vmem [resolvable:$true] %s20
      %23 = dma.vmem_to_smem %s21, 16, [#allocation2], [#allocation3]
    $region5: #{_lambda_.2} parent=1 // pred_fallthru
      _
    // Predicated region
    $region6: #{_lambda_.2} parent=1 // pred_check
      _
    $region7: #{_lambda_.2} parent=1 // pred_check_branch
      %25 = sbr.rel (0) target = $region9
    $region8: #{_lambda_.2} parent=1 // pred_region
      _
    $region9: #{_lambda_.2} parent=1 // pred_fallthru
      _
    // Predicated region
    $region10: #{_lambda_.2} parent=1 // pred_check
      _
    $region11: #{_lambda_.2} parent=1 // pred_check_branch
      %27 = sbr.rel (0) target = $region13
    $region12: #{_lambda_.2} parent=1 // pred_region
      _
    $region13: #{_lambda_.2} parent=1 // pred_fallthru
      _
    // Predicated region
    $region14: #{_lambda_.2} parent=1 // pred_check
      _
    $region15: #{_lambda_.2} parent=1 // pred_check_branch
      %29 = sbr.rel (0) target = $region17
    $region16: #{_lambda_.2} parent=1 // pred_region
      _
    $region17: #{_lambda_.2} parent=1 // pred_fallthru
      _
    // Predicated region
    $region18: #{_lambda_.2} parent=1 // pred_check
      _
    $region19: #{_lambda_.2} parent=1 // pred_check_branch
      %31 = sbr.rel (0) target = $region21
    $region20: #{_lambda_.2} parent=1 // pred_region
      _
    $region21: #{_lambda_.2} parent=1 // pred_fallthru
      _
    // Predicated region
    $region22: #{_lambda_.2} parent=1 // pred_check
      _
    $region23: #{_lambda_.2} parent=1 // pred_check_branch
      %33 = sbr.rel (0) target = $region25
    $region24: #{_lambda_.2} parent=1 // pred_region
      %34 = dma.done [#allocation3], 16
    $region25: #{_lambda_.2} parent=1 // pred_fallthru
      _
    %35 = sfence
    %v37 = vld [vmem:[%s1] sm:$0xff]
    %v38 = vld [vmem:[%s1 + $0x8] sm:$0xff]
    %v39 = vld [vmem:[%s1 + $0x10] sm:$0xff]
    %v40 = vld [vmem:[%s1 + $0x18] sm:$0xff]
    %v41 = vld [vmem:[%s1 + $0x20] sm:$0xff]
    %v42 = vld [vmem:[%s1 + $0x28] sm:$0xff]
    %v43 = vld [vmem:[%s1 + $0x30] sm:$0xff]
    %v44 = vld [vmem:[%s1 + $0x38] sm:$0xff]
    %v45 = vld [vmem:[%s1 + $0x40] sm:$0xff]
    %v46 = vld [vmem:[%s1 + $0x48] sm:$0xff]
    %v47 = vld [vmem:[%s1 + $0x50] sm:$0xff]
    %v48 = vld [vmem:[%s1 + $0x58] sm:$0xff]
    %v49 = vld [vmem:[%s1 + $0x60] sm:$0xff]
    %v50 = vld [vmem:[%s1 + $0x68] sm:$0xff]
    %v51 = vld [vmem:[%s1 + $0x70] sm:$0xff]
    %v52 = vld [vmem:[%s1 + $0x78] sm:$0xff]
    %s53 = sld [smem:[#allocation2]]
    %s54 = sld [smem:[#allocation2 + $0x1]]
    %v55 = vxor.u32 %v37, 2147483648
    %v56 = vxor.u32 %v38, 2147483648
    %v57 = vxor.u32 %v39, 2147483648
    %v58 = vxor.u32 %v40, 2147483648
    %v59 = vxor.u32 %v41, 2147483648
    %v60 = vxor.u32 %v42, 2147483648
    %v61 = vxor.u32 %v43, 2147483648
    %v62 = vxor.u32 %v44, 2147483648
    %v63 = vxor.u32 %v45, 2147483648
    %v64 = vxor.u32 %v46, 2147483648
    %v65 = vxor.u32 %v47, 2147483648
    %v66 = vxor.u32 %v48, 2147483648
    %v67 = vxor.u32 %v49, 2147483648
    %v68 = vxor.u32 %v50, 2147483648
    %v69 = vxor.u32 %v51, 2147483648
    %v70 = vxor.u32 %v52, 2147483648
    %v71 = vmul.f32 %v55, 1.442695
    %v72 = vpow.pop %v71
    %v73 = vmul.f32 %v56, 1.442695
    %v74 = vpow.pop %v73
    %v75 = vmul.f32 %v57, 1.442695
    %v76 = vpow.pop %v75
    %v77 = vmul.f32 %v58, 1.442695
    %v78 = vpow.pop %v77
    %v79 = vmul.f32 %v59, 1.442695
    %v80 = vpow.pop %v79
    %v81 = vmul.f32 %v60, 1.442695
    %v82 = vpow.pop %v81
    %v83 = vmul.f32 %v61, 1.442695
    %v84 = vpow.pop %v83
    %v85 = vmul.f32 %v62, 1.442695
    %v86 = vpow.pop %v85
    %v87 = vmul.f32 %v63, 1.442695
    %v88 = vpow.pop %v87
    %v89 = vmul.f32 %v64, 1.442695
    %v90 = vpow.pop %v89
    %v91 = vmul.f32 %v65, 1.442695
    %v92 = vpow.pop %v91
    %v93 = vmul.f32 %v66, 1.442695
    %v94 = vpow.pop %v93
    %v95 = vmul.f32 %v67, 1.442695
    %v96 = vpow.pop %v95
    %v97 = vmul.f32 %v68, 1.442695
    %v98 = vpow.pop %v97
    %v99 = vmul.f32 %v69, 1.442695
    %v100 = vpow.pop %v99
    %v101 = vmul.f32 %v70, 1.442695
    %v102 = vpow.pop %v101
    %v103 = vadd.f32 %v72, 1.0
    %v104 = vadd.f32 %v74, 1.0
    %v105 = vadd.f32 %v76, 1.0
    %v106 = vadd.f32 %v78, 1.0
    %v107 = vadd.f32 %v80, 1.0
    %v108 = vadd.f32 %v82, 1.0
    %v109 = vadd.f32 %v84, 1.0
    %v110 = vadd.f32 %v86, 1.0
    %v111 = vadd.f32 %v88, 1.0
    %v112 = vadd.f32 %v90, 1.0
    %v113 = vadd.f32 %v92, 1.0
    %v114 = vadd.f32 %v94, 1.0
    %v115 = vadd.f32 %v96, 1.0
    %v116 = vadd.f32 %v98, 1.0
    %v117 = vadd.f32 %v100, 1.0
    %v118 = vadd.f32 %v102, 1.0
    %v119 = vrcp.pop %v103
    %v120 = vmul.f32 1.0, %v119
    %v121 = vrcp.pop %v104
    %v122 = vmul.f32 1.0, %v121
    %v123 = vrcp.pop %v105
    %v124 = vmul.f32 1.0, %v123
    %v125 = vrcp.pop %v106
    %v126 = vmul.f32 1.0, %v125
    %v127 = vrcp.pop %v107
    %v128 = vmul.f32 1.0, %v127
    %v129 = vrcp.pop %v108
    %v130 = vmul.f32 1.0, %v129
    %v131 = vrcp.pop %v109
    %v132 = vmul.f32 1.0, %v131
    %v133 = vrcp.pop %v110
    %v134 = vmul.f32 1.0, %v133
    %v135 = vrcp.pop %v111
    %v136 = vmul.f32 1.0, %v135
    %v137 = vrcp.pop %v112
    %v138 = vmul.f32 1.0, %v137
    %v139 = vrcp.pop %v113
    %v140 = vmul.f32 1.0, %v139
    %v141 = vrcp.pop %v114
    %v142 = vmul.f32 1.0, %v141
    %v143 = vrcp.pop %v115
    %v144 = vmul.f32 1.0, %v143
    %v145 = vrcp.pop %v116
    %v146 = vmul.f32 1.0, %v145
    %v147 = vrcp.pop %v117
    %v148 = vmul.f32 1.0, %v147
    %v149 = vrcp.pop %v118
    %v150 = vmul.f32 1.0, %v149
    %v151 = vmul.f32 %v37, %v120
    %v152 = vmul.f32 %v38, %v122
    %v153 = vmul.f32 %v39, %v124
    %v154 = vmul.f32 %v40, %v126
    %v155 = vmul.f32 %v41, %v128
    %v156 = vmul.f32 %v42, %v130
    %v157 = vmul.f32 %v43, %v132
    %v158 = vmul.f32 %v44, %v134
    %v159 = vmul.f32 %v45, %v136
    %v160 = vmul.f32 %v46, %v138
    %v161 = vmul.f32 %v47, %v140
    %v162 = vmul.f32 %v48, %v142
    %v163 = vmul.f32 %v49, %v144
    %v164 = vmul.f32 %v50, %v146
    %v165 = vmul.f32 %v51, %v148
    %v166 = vmul.f32 %v52, %v150
    %v167 = vstv %s53
    %v168 = vsub.f32 %v37, %v167
    %v169 = vsub.f32 %v38, %v167
    %v170 = vsub.f32 %v39, %v167
    %v171 = vsub.f32 %v40, %v167
    %v172 = vsub.f32 %v41, %v167
    %v173 = vsub.f32 %v42, %v167
    %v174 = vsub.f32 %v43, %v167
    %v175 = vsub.f32 %v44, %v167
    %v176 = vsub.f32 %v45, %v167
    %v177 = vsub.f32 %v46, %v167
    %v178 = vsub.f32 %v47, %v167
    %v179 = vsub.f32 %v48, %v167
    %v180 = vsub.f32 %v49, %v167
    %v181 = vsub.f32 %v50, %v167
    %v182 = vsub.f32 %v51, %v167
    %v183 = vsub.f32 %v52, %v167
    %v184 = vstv %s54
    %v185 = vmul.f32 %v168, %v184
    %v186 = vmul.f32 %v169, %v184
    %v187 = vmul.f32 %v170, %v184
    %v188 = vmul.f32 %v171, %v184
    %v189 = vmul.f32 %v172, %v184
    %v190 = vmul.f32 %v173, %v184
    %v191 = vmul.f32 %v174, %v184
    %v192 = vmul.f32 %v175, %v184
    %v193 = vmul.f32 %v176, %v184
    %v194 = vmul.f32 %v177, %v184
    %v195 = vmul.f32 %v178, %v184
    %v196 = vmul.f32 %v179, %v184
    %v197 = vmul.f32 %v180, %v184
    %v198 = vmul.f32 %v181, %v184
    %v199 = vmul.f32 %v182, %v184
    %v200 = vmul.f32 %v183, %v184
    %v201 = vsub.f32 %v185, 1.0
    %v202 = vsub.f32 %v186, 1.0
    %v203 = vsub.f32 %v187, 1.0
    %v204 = vsub.f32 %v188, 1.0
    %v205 = vsub.f32 %v189, 1.0
    %v206 = vsub.f32 %v190, 1.0
    %v207 = vsub.f32 %v191, 1.0
    %v208 = vsub.f32 %v192, 1.0
    %v209 = vsub.f32 %v193, 1.0
    %v210 = vsub.f32 %v194, 1.0
    %v211 = vsub.f32 %v195, 1.0
    %v212 = vsub.f32 %v196, 1.0
    %v213 = vsub.f32 %v197, 1.0
    %v214 = vsub.f32 %v198, 1.0
    %v215 = vsub.f32 %v199, 1.0
    %v216 = vsub.f32 %v200, 1.0
    %v217 = vmul.f32 %v201, 3.0
    %v218 = vmul.f32 %v202, 3.0
    %v219 = vmul.f32 %v203, 3.0
    %v220 = vmul.f32 %v204, 3.0
    %v221 = vmul.f32 %v205, 3.0
    %v222 = vmul.f32 %v206, 3.0
    %v223 = vmul.f32 %v207, 3.0
    %v224 = vmul.f32 %v208, 3.0
    %v225 = vmul.f32 %v209, 3.0
    %v226 = vmul.f32 %v210, 3.0
    %v227 = vmul.f32 %v211, 3.0
    %v228 = vmul.f32 %v212, 3.0
    %v229 = vmul.f32 %v213, 3.0
    %v230 = vmul.f32 %v214, 3.0
    %v231 = vmul.f32 %v215, 3.0
    %v232 = vmul.f32 %v216, 3.0
    %v233 = vmul.f32 %v217, %v201
    %v234 = vmul.f32 %v218, %v202
    %v235 = vmul.f32 %v219, %v203
    %v236 = vmul.f32 %v220, %v204
    %v237 = vmul.f32 %v221, %v205
    %v238 = vmul.f32 %v222, %v206
    %v239 = vmul.f32 %v223, %v207
    %v240 = vmul.f32 %v224, %v208
    %v241 = vmul.f32 %v225, %v209
    %v242 = vmul.f32 %v226, %v210
    %v243 = vmul.f32 %v227, %v211
    %v244 = vmul.f32 %v228, %v212
    %v245 = vmul.f32 %v229, %v213
    %v246 = vmul.f32 %v230, %v214
    %v247 = vmul.f32 %v231, %v215
    %v248 = vmul.f32 %v232, %v216
    %v249 = vsub.f32 %v233, 1.0
    %v250 = vsub.f32 %v234, 1.0
    %v251 = vsub.f32 %v235, 1.0
    %v252 = vsub.f32 %v236, 1.0
    %v253 = vsub.f32 %v237, 1.0
    %v254 = vsub.f32 %v238, 1.0
    %v255 = vsub.f32 %v239, 1.0
    %v256 = vsub.f32 %v240, 1.0
    %v257 = vsub.f32 %v241, 1.0
    %v258 = vsub.f32 %v242, 1.0
    %v259 = vsub.f32 %v243, 1.0
    %v260 = vsub.f32 %v244, 1.0
    %v261 = vsub.f32 %v245, 1.0
    %v262 = vsub.f32 %v246, 1.0
    %v263 = vsub.f32 %v247, 1.0
    %v264 = vsub.f32 %v248, 1.0
    %v265 = vmul.f32 %v249, 0.5
    %v266 = vmul.f32 %v250, 0.5
    %v267 = vmul.f32 %v251, 0.5
    %v268 = vmul.f32 %v252, 0.5
    %v269 = vmul.f32 %v253, 0.5
    %v270 = vmul.f32 %v254, 0.5
    %v271 = vmul.f32 %v255, 0.5
    %v272 = vmul.f32 %v256, 0.5
    %v273 = vmul.f32 %v257, 0.5
    %v274 = vmul.f32 %v258, 0.5
    %v275 = vmul.f32 %v259, 0.5
    %v276 = vmul.f32 %v260, 0.5
    %v277 = vmul.f32 %v261, 0.5
    %v278 = vmul.f32 %v262, 0.5
    %v279 = vmul.f32 %v263, 0.5
    %v280 = vmul.f32 %v264, 0.5
    %v281 = vmul.f32 %v201, 5.0
    %v282 = vmul.f32 %v202, 5.0
    %v283 = vmul.f32 %v203, 5.0
    %v284 = vmul.f32 %v204, 5.0
    %v285 = vmul.f32 %v205, 5.0
    %v286 = vmul.f32 %v206, 5.0
    %v287 = vmul.f32 %v207, 5.0
    %v288 = vmul.f32 %v208, 5.0
    %v289 = vmul.f32 %v209, 5.0
    %v290 = vmul.f32 %v210, 5.0
    %v291 = vmul.f32 %v211, 5.0
    %v292 = vmul.f32 %v212, 5.0
    %v293 = vmul.f32 %v213, 5.0
    %v294 = vmul.f32 %v214, 5.0
    %v295 = vmul.f32 %v215, 5.0
    %v296 = vmul.f32 %v216, 5.0
    %v297 = vmul.f32 %v281, %v265
    %v298 = vmul.f32 %v282, %v266
    %v299 = vmul.f32 %v283, %v267
    %v300 = vmul.f32 %v284, %v268
    %v301 = vmul.f32 %v285, %v269
    %v302 = vmul.f32 %v286, %v270
    %v303 = vmul.f32 %v287, %v271
    %v304 = vmul.f32 %v288, %v272
    %v305 = vmul.f32 %v289, %v273
    %v306 = vmul.f32 %v290, %v274
    %v307 = vmul.f32 %v291, %v275
    %v308 = vmul.f32 %v292, %v276
    %v309 = vmul.f32 %v293, %v277
    %v310 = vmul.f32 %v294, %v278
    %v311 = vmul.f32 %v295, %v279
    %v312 = vmul.f32 %v296, %v280
    %v313 = vmul.f32 %v201, 2.0
    %v314 = vmul.f32 %v202, 2.0
    %v315 = vmul.f32 %v203, 2.0
    %v316 = vmul.f32 %v204, 2.0
    %v317 = vmul.f32 %v205, 2.0
    %v318 = vmul.f32 %v206, 2.0
    %v319 = vmul.f32 %v207, 2.0
    %v320 = vmul.f32 %v208, 2.0
    %v321 = vmul.f32 %v209, 2.0
    %v322 = vmul.f32 %v210, 2.0
    %v323 = vmul.f32 %v211, 2.0
    %v324 = vmul.f32 %v212, 2.0
    %v325 = vmul.f32 %v213, 2.0
    %v326 = vmul.f32 %v214, 2.0
    %v327 = vmul.f32 %v215, 2.0
    %v328 = vmul.f32 %v216, 2.0
    %v329 = vsub.f32 %v297, %v313
    %v330 = vsub.f32 %v298, %v314
    %v331 = vsub.f32 %v299, %v315
    %v332 = vsub.f32 %v300, %v316
    %v333 = vsub.f32 %v301, %v317
    %v334 = vsub.f32 %v302, %v318
    %v335 = vsub.f32 %v303, %v319
    %v336 = vsub.f32 %v304, %v320
    %v337 = vsub.f32 %v305, %v321
    %v338 = vsub.f32 %v306, %v322
    %v339 = vsub.f32 %v307, %v323
    %v340 = vsub.f32 %v308, %v324
    %v341 = vsub.f32 %v309, %v325
    %v342 = vsub.f32 %v310, %v326
    %v343 = vsub.f32 %v311, %v327
    %v344 = vsub.f32 %v312, %v328
    %v345 = vmul.f32 %v329, 0.33333334
    %v346 = vmul.f32 %v330, 0.33333334
    %v347 = vmul.f32 %v331, 0.33333334
    %v348 = vmul.f32 %v332, 0.33333334
    %v349 = vmul.f32 %v333, 0.33333334
    %v350 = vmul.f32 %v334, 0.33333334
    %v351 = vmul.f32 %v335, 0.33333334
    %v352 = vmul.f32 %v336, 0.33333334
    %v353 = vmul.f32 %v337, 0.33333334
    %v354 = vmul.f32 %v338, 0.33333334
    %v355 = vmul.f32 %v339, 0.33333334
    %v356 = vmul.f32 %v340, 0.33333334
    %v357 = vmul.f32 %v341, 0.33333334
    %v358 = vmul.f32 %v342, 0.33333334
    %v359 = vmul.f32 %v343, 0.33333334
    %v360 = vmul.f32 %v344, 0.33333334
    %377 = vrot.lane.b32.xlu0 %v201, 64
    %v378 = vpop.permute.xlu0 %377
    %379 = vrot.lane.b32.xlu0 %v202, 64
    %v380 = vpop.permute.xlu0 %379
    %381 = vrot.lane.b32.xlu0 %v203, 64
    %v382 = vpop.permute.xlu0 %381
    %383 = vrot.lane.b32.xlu0 %v204, 64
    %v384 = vpop.permute.xlu0 %383
    %385 = vrot.lane.b32.xlu0 %v205, 64
    %v386 = vpop.permute.xlu0 %385
    %387 = vrot.lane.b32.xlu0 %v206, 64
    %v388 = vpop.permute.xlu0 %387
    %389 = vrot.lane.b32.xlu0 %v207, 64
    %v390 = vpop.permute.xlu0 %389
    %391 = vrot.lane.b32.xlu0 %v208, 64
    %v392 = vpop.permute.xlu0 %391
    %393 = vrot.lane.b32.xlu0 %v209, 64
    %v394 = vpop.permute.xlu0 %393
    %395 = vrot.lane.b32.xlu0 %v210, 64
    %v396 = vpop.permute.xlu0 %395
    %397 = vrot.lane.b32.xlu0 %v211, 64
    %v398 = vpop.permute.xlu0 %397
    %399 = vrot.lane.b32.xlu0 %v212, 64
    %v400 = vpop.permute.xlu0 %399
    %401 = vrot.lane.b32.xlu0 %v213, 64
    %v402 = vpop.permute.xlu0 %401
    %403 = vrot.lane.b32.xlu0 %v214, 64
    %v404 = vpop.permute.xlu0 %403
    %405 = vrot.lane.b32.xlu0 %v215, 64
    %v406 = vpop.permute.xlu0 %405
    %407 = vrot.lane.b32.xlu0 %v216, 64
    %v408 = vpop.permute.xlu0 %407
    %441 = vrot.lane.b32.xlu0 %v265, 96
    %v442 = vpop.permute.xlu0 %441
    %443 = vrot.lane.b32.xlu0 %v266, 96
    %v444 = vpop.permute.xlu0 %443
    %445 = vrot.lane.b32.xlu0 %v267, 96
    %v446 = vpop.permute.xlu0 %445
    %447 = vrot.lane.b32.xlu0 %v268, 96
    %v448 = vpop.permute.xlu0 %447
    %449 = vrot.lane.b32.xlu0 %v269, 96
    %v450 = vpop.permute.xlu0 %449
    %451 = vrot.lane.b32.xlu0 %v270, 96
    %v452 = vpop.permute.xlu0 %451
    %453 = vrot.lane.b32.xlu0 %v271, 96
    %v454 = vpop.permute.xlu0 %453
    %455 = vrot.lane.b32.xlu0 %v272, 96
    %v456 = vpop.permute.xlu0 %455
    %457 = vrot.lane.b32.xlu0 %v273, 96
    %v458 = vpop.permute.xlu0 %457
    %459 = vrot.lane.b32.xlu0 %v274, 96
    %v460 = vpop.permute.xlu0 %459
    %461 = vrot.lane.b32.xlu0 %v275, 96
    %v462 = vpop.permute.xlu0 %461
    %463 = vrot.lane.b32.xlu0 %v276, 96
    %v464 = vpop.permute.xlu0 %463
    %465 = vrot.lane.b32.xlu0 %v277, 96
    %v466 = vpop.permute.xlu0 %465
    %467 = vrot.lane.b32.xlu0 %v278, 96
    %v468 = vpop.permute.xlu0 %467
    %469 = vrot.lane.b32.xlu0 %v279, 96
    %v470 = vpop.permute.xlu0 %469
    %471 = vrot.lane.b32.xlu0 %v280, 96
    %v472 = vpop.permute.xlu0 %471
    %vm489 = vcmask 261120
    %v490 = vsel %vm489, %v151, 1.0
    %v491 = vsel %vm489, %v152, 1.0
    %v492 = vsel %vm489, %v153, 1.0
    %v493 = vsel %vm489, %v154, 1.0
    %v494 = vsel %vm489, %v155, 1.0
    %v495 = vsel %vm489, %v156, 1.0
    %v496 = vsel %vm489, %v157, 1.0
    %v497 = vsel %vm489, %v158, 1.0
    %v498 = vsel %vm489, %v159, 1.0
    %v499 = vsel %vm489, %v160, 1.0
    %v500 = vsel %vm489, %v161, 1.0
    %v501 = vsel %vm489, %v162, 1.0
    %v502 = vsel %vm489, %v163, 1.0
    %v503 = vsel %vm489, %v164, 1.0
    %v504 = vsel %vm489, %v165, 1.0
    %v505 = vsel %vm489, %v166, 1.0
    %vm506 = vcmask 523264
    %v507 = vsel %vm506, %v490, %v378
    %v508 = vsel %vm506, %v491, %v380
    %v509 = vsel %vm506, %v492, %v382
    %v510 = vsel %vm506, %v493, %v384
    %v511 = vsel %vm506, %v494, %v386
    %v512 = vsel %vm506, %v495, %v388
    %v513 = vsel %vm506, %v496, %v390
    %v514 = vsel %vm506, %v497, %v392
    %v515 = vsel %vm506, %v498, %v394
    %v516 = vsel %vm506, %v499, %v396
    %v517 = vsel %vm506, %v500, %v398
    %v518 = vsel %vm506, %v501, %v400
    %v519 = vsel %vm506, %v502, %v402
    %v520 = vsel %vm506, %v503, %v404
    %v521 = vsel %vm506, %v504, %v406
    %v522 = vsel %vm506, %v505, %v408
    %vm523 = vcmask 785408
    %v524 = vsel %vm523, %v507, %v442
    %v525 = vsel %vm523, %v508, %v444
    %v526 = vsel %vm523, %v509, %v446
    %v527 = vsel %vm523, %v510, %v448
    %v528 = vsel %vm523, %v511, %v450
    %v529 = vsel %vm523, %v512, %v452
    %v530 = vsel %vm523, %v513, %v454
    %v531 = vsel %vm523, %v514, %v456
    %v532 = vsel %vm523, %v515, %v458
    %v533 = vsel %vm523, %v516, %v460
    %v534 = vsel %vm523, %v517, %v462
    %v535 = vsel %vm523, %v518, %v464
    %v536 = vsel %vm523, %v519, %v466
    %v537 = vsel %vm523, %v520, %v468
    %v538 = vsel %vm523, %v521, %v470
    %v539 = vsel %vm523, %v522, %v472
    %v540 = vsel %vm489, %v345, 0.0
    %v541 = vsel %vm489, %v346, 0.0
    %v542 = vsel %vm489, %v347, 0.0
    %v543 = vsel %vm489, %v348, 0.0
    %v544 = vsel %vm489, %v349, 0.0
    %v545 = vsel %vm489, %v350, 0.0
    %v546 = vsel %vm489, %v351, 0.0
    %v547 = vsel %vm489, %v352, 0.0
    %v548 = vsel %vm489, %v353, 0.0
    %v549 = vsel %vm489, %v354, 0.0
    %v550 = vsel %vm489, %v355, 0.0
    %v551 = vsel %vm489, %v356, 0.0
    %v552 = vsel %vm489, %v357, 0.0
    %v553 = vsel %vm489, %v358, 0.0
    %v554 = vsel %vm489, %v359, 0.0
    %v555 = vsel %vm489, %v360, 0.0
    %v556 = vpack.c.bf16 %v525, %v524
    %v557 = vpack.c.bf16 %v541, %v540
    %v558 = vpack.c.bf16 %v527, %v526
    %v559 = vpack.c.bf16 %v543, %v542
    %v560 = vpack.c.bf16 %v529, %v528
    %v561 = vpack.c.bf16 %v545, %v544
    %v562 = vpack.c.bf16 %v531, %v530
    %v563 = vpack.c.bf16 %v547, %v546
    %v564 = vpack.c.bf16 %v533, %v532
    %v565 = vpack.c.bf16 %v549, %v548
    %v566 = vpack.c.bf16 %v535, %v534
    %v567 = vpack.c.bf16 %v551, %v550
    %v568 = vpack.c.bf16 %v537, %v536
    %v569 = vpack.c.bf16 %v553, %v552
    %v570 = vpack.c.bf16 %v539, %v538
    %v571 = vpack.c.bf16 %v555, %v554
    %v572 = vld [vmem:[%s2] sm:$0xf]
    %v573 = vld [vmem:[%s2 + $0x4] sm:$0xf]
    %v574 = vld [vmem:[%s2 + $0x8] sm:$0xf]
    %v575 = vld [vmem:[%s2 + $0xc] sm:$0xf]
    %v576 = vld [vmem:[%s2 + $0x10] sm:$0xf]
    %v577 = vld [vmem:[%s2 + $0x14] sm:$0xf]
    %v578 = vld [vmem:[%s2 + $0x18] sm:$0xf]
    %v579 = vld [vmem:[%s2 + $0x1c] sm:$0xf]
    %v580 = vld [vmem:[%s2 + $0x20] sm:$0xf]
    %v581 = vld [vmem:[%s2 + $0x24] sm:$0xf]
    %v582 = vld [vmem:[%s2 + $0x28] sm:$0xf]
    %v583 = vld [vmem:[%s2 + $0x2c] sm:$0xf]
    %v584 = vld [vmem:[%s2 + $0x30] sm:$0xf]
    %v585 = vld [vmem:[%s2 + $0x34] sm:$0xf]
    %v586 = vld [vmem:[%s2 + $0x38] sm:$0xf]
    %v587 = vld [vmem:[%s2 + $0x3c] sm:$0xf]
    %v588 = vld [vmem:[%s2 + $0x40] sm:$0xf]
    %v589 = vld [vmem:[%s2 + $0x44] sm:$0xf]
    %v590 = vld [vmem:[%s2 + $0x48] sm:$0xf]
    %v591 = vld [vmem:[%s2 + $0x4c] sm:$0xf]
    %v592 = vld [vmem:[%s2 + $0x50] sm:$0xf]
    %v593 = vld [vmem:[%s2 + $0x54] sm:$0xf]
    %v594 = vld [vmem:[%s2 + $0x58] sm:$0xf]
    %v595 = vld [vmem:[%s2 + $0x5c] sm:$0xf]
    %v596 = vld [vmem:[%s2 + $0x60] sm:$0xf]
    %v597 = vld [vmem:[%s2 + $0x64] sm:$0xf]
    %v598 = vld [vmem:[%s2 + $0x68] sm:$0xf]
    %v599 = vld [vmem:[%s2 + $0x6c] sm:$0xf]
    %v600 = vld [vmem:[%s2 + $0x70] sm:$0xf]
    %v601 = vld [vmem:[%s2 + $0x74] sm:$0xf]
    %v602 = vld [vmem:[%s2 + $0x78] sm:$0xf]
    %v603 = vld [vmem:[%s2 + $0x7c] sm:$0xf]
    %v636 = vunpack.c.l.b16 %v572
    %v637 = vunpack.c.l.b16 %v573
    %v638 = vunpack.c.l.b16 %v574
    %v639 = vunpack.c.l.b16 %v575
    %v640 = vunpack.c.l.b16 %v576
    %v641 = vunpack.c.l.b16 %v577
    %v642 = vunpack.c.l.b16 %v578
    %v643 = vunpack.c.l.b16 %v579
    %v644 = vunpack.c.l.b16 %v580
    %v645 = vunpack.c.l.b16 %v581
    %v646 = vunpack.c.l.b16 %v582
    %v647 = vunpack.c.l.b16 %v583
    %v648 = vunpack.c.l.b16 %v584
    %v649 = vunpack.c.l.b16 %v585
    %v650 = vunpack.c.l.b16 %v586
    %v651 = vunpack.c.l.b16 %v587
    %v652 = vunpack.c.l.b16 %v588
    %v653 = vunpack.c.l.b16 %v589
    %v654 = vunpack.c.l.b16 %v590
    %v655 = vunpack.c.l.b16 %v591
    %v656 = vunpack.c.l.b16 %v592
    %v657 = vunpack.c.l.b16 %v593
    %v658 = vunpack.c.l.b16 %v594
    %v659 = vunpack.c.l.b16 %v595
    %v660 = vunpack.c.l.b16 %v596
    %v661 = vunpack.c.l.b16 %v597
    %v662 = vunpack.c.l.b16 %v598
    %v663 = vunpack.c.l.b16 %v599
    %v664 = vunpack.c.l.b16 %v600
    %v665 = vunpack.c.l.b16 %v601
    %v666 = vunpack.c.l.b16 %v602
    %v667 = vunpack.c.l.b16 %v603
    %v668 = vpack.c.b16 %v637, %v636
    %v669 = vpack.c.b16 %v639, %v638
    %v670 = vpack.c.b16 %v641, %v640
    %v671 = vpack.c.b16 %v643, %v642
    %v672 = vpack.c.b16 %v645, %v644
    %v673 = vpack.c.b16 %v647, %v646
    %v674 = vpack.c.b16 %v649, %v648
    %v675 = vpack.c.b16 %v651, %v650
    %v676 = vpack.c.b16 %v653, %v652
    %v677 = vpack.c.b16 %v655, %v654
    %v678 = vpack.c.b16 %v657, %v656
    %v679 = vpack.c.b16 %v659, %v658
    %v680 = vpack.c.b16 %v661, %v660
    %v681 = vpack.c.b16 %v663, %v662
    %v682 = vpack.c.b16 %v665, %v664
    %v683 = vpack.c.b16 %v667, %v666
    %700 = vmatprep.subr.bf16.mxu0 0
    %701 = vmatpush1.bf16.msra.mxu0 %v668
    %702 = vmatprep.subr.bf16.mxu0 0
    %703 = vmatpush1.bf16.msra.mxu0 %v669
    %704 = vmatprep.subr.bf16.mxu0 0
    %705 = vmatpush1.bf16.msra.mxu0 %v670
    %706 = vmatprep.subr.bf16.mxu0 0
    %707 = vmatpush1.bf16.msra.mxu0 %v671
    %708 = vmatprep.subr.bf16.mxu0 0
    %709 = vmatpush1.bf16.msra.mxu0 %v672
    %710 = vmatprep.subr.bf16.mxu0 0
    %711 = vmatpush1.bf16.msra.mxu0 %v673
    %712 = vmatprep.subr.bf16.mxu0 0
    %713 = vmatpush1.bf16.msra.mxu0 %v674
    %714 = vmatprep.subr.bf16.mxu0 0
    %715 = vmatpush1.bf16.msra.mxu0 %v675
    %716 = vmatprep.subr.bf16.mxu0 0
    %717 = vmatpush1.bf16.msra.mxu0 %v676
    %718 = vmatprep.subr.bf16.mxu0 0
    %719 = vmatpush1.bf16.msra.mxu0 %v677
    %720 = vmatprep.subr.bf16.mxu0 0
    %721 = vmatpush1.bf16.msra.mxu0 %v678
    %722 = vmatprep.subr.bf16.mxu0 0
    %723 = vmatpush1.bf16.msra.mxu0 %v679
    %724 = vmatprep.subr.bf16.mxu0 0
    %725 = vmatpush1.bf16.msra.mxu0 %v680
    %726 = vmatprep.subr.bf16.mxu0 0
    %727 = vmatpush1.bf16.msra.mxu0 %v681
    %728 = vmatprep.subr.bf16.mxu0 0
    %729 = vmatpush1.bf16.msra.mxu0 %v682
    %730 = vmatprep.subr.bf16.mxu0 0
    %731 = vmatpush1.bf16.msra.mxu0 %v683
    %732 = vmatprep.mubr.bf16.mxu0 %v557
    %733 = vmatmul.mubr.bf16.gmra.mrb[0].mxu0 %v556
    %v734 = vpop.f32.mrb[0].mxu0
    %v735 = vadd.f32 0.0, %v734
    %v736 = vpop.f32.mrb[0].mxu0
    %v737 = vpop.f32.mrb[0].mxu0
    %v738 = vadd.f32 0.0, %v737
    %v739 = vpop.f32.mrb[0].mxu0
    %740 = vmatprep.mubr.bf16.mxu0 %v559
    %741 = vmatmul.mubr.bf16.gmra.mrb[0].mxu0 %v558
    %v742 = vpop.f32.mrb[0].mxu0
    %v743 = vadd.f32 0.0, %v742
    %v744 = vpop.f32.mrb[0].mxu0
    %v745 = vpop.f32.mrb[0].mxu0
    %v746 = vadd.f32 0.0, %v745
    %v747 = vpop.f32.mrb[0].mxu0
    %748 = vmatprep.mubr.bf16.mxu0 %v561
    %749 = vmatmul.mubr.bf16.gmra.mrb[0].mxu0 %v560
    %v750 = vpop.f32.mrb[0].mxu0
    %v751 = vadd.f32 0.0, %v750
    %v752 = vpop.f32.mrb[0].mxu0
    %v753 = vpop.f32.mrb[0].mxu0
    %v754 = vadd.f32 0.0, %v753
    %v755 = vpop.f32.mrb[0].mxu0
    %756 = vmatprep.mubr.bf16.mxu0 %v563
    %757 = vmatmul.mubr.bf16.gmra.mrb[0].mxu0 %v562
    %v758 = vpop.f32.mrb[0].mxu0
    %v759 = vadd.f32 0.0, %v758
    %v760 = vpop.f32.mrb[0].mxu0
    %v761 = vpop.f32.mrb[0].mxu0
    %v762 = vadd.f32 0.0, %v761
    %v763 = vpop.f32.mrb[0].mxu0
    %764 = vmatprep.mubr.bf16.mxu0 %v565
    %765 = vmatmul.mubr.bf16.gmra.mrb[0].mxu0 %v564
    %v766 = vpop.f32.mrb[0].mxu0
    %v767 = vadd.f32 0.0, %v766
    %v768 = vpop.f32.mrb[0].mxu0
    %v769 = vpop.f32.mrb[0].mxu0
    %v770 = vadd.f32 0.0, %v769
    %v771 = vpop.f32.mrb[0].mxu0
    %772 = vmatprep.mubr.bf16.mxu0 %v567
    %773 = vmatmul.mubr.bf16.gmra.mrb[0].mxu0 %v566
    %v774 = vpop.f32.mrb[0].mxu0
    %v775 = vadd.f32 0.0, %v774
    %v776 = vpop.f32.mrb[0].mxu0
    %v777 = vpop.f32.mrb[0].mxu0
    %v778 = vadd.f32 0.0, %v777
    %v779 = vpop.f32.mrb[0].mxu0
    %780 = vmatprep.mubr.bf16.mxu0 %v569
    %781 = vmatmul.mubr.bf16.gmra.mrb[0].mxu0 %v568
    %v782 = vpop.f32.mrb[0].mxu0
    %v783 = vadd.f32 0.0, %v782
    %v784 = vpop.f32.mrb[0].mxu0
    %v785 = vpop.f32.mrb[0].mxu0
    %v786 = vadd.f32 0.0, %v785
    %v787 = vpop.f32.mrb[0].mxu0
    %788 = vmatprep.mubr.bf16.mxu0 %v571
    %789 = vmatmul.mubr.bf16.gmra.mrb[0].mxu0 %v570
    %v790 = vpop.f32.mrb[0].mxu0
    %v791 = vadd.f32 0.0, %v790
    %v792 = vpop.f32.mrb[0].mxu0
    %v793 = vpop.f32.mrb[0].mxu0
    %v794 = vadd.f32 0.0, %v793
    %v795 = vpop.f32.mrb[0].mxu0
    %796 = vdwg.mxu0
    %797 = vadd.xlane.f32.xlu0 %v735
    %v798 = vpop.xlane.xlu0 %797
    %799 = vadd.xlane.f32.xlu0 %v738
    %v800 = vpop.xlane.xlu0 %799
    %801 = vadd.xlane.f32.xlu0 %v743
    %v802 = vpop.xlane.xlu0 %801
    %803 = vadd.xlane.f32.xlu0 %v746
    %v804 = vpop.xlane.xlu0 %803
    %805 = vadd.xlane.f32.xlu0 %v751
    %v806 = vpop.xlane.xlu0 %805
    %807 = vadd.xlane.f32.xlu0 %v754
    %v808 = vpop.xlane.xlu0 %807
    %809 = vadd.xlane.f32.xlu0 %v759
    %v810 = vpop.xlane.xlu0 %809
    %811 = vadd.xlane.f32.xlu0 %v762
    %v812 = vpop.xlane.xlu0 %811
    %813 = vadd.xlane.f32.xlu0 %v767
    %v814 = vpop.xlane.xlu0 %813
    %815 = vadd.xlane.f32.xlu0 %v770
    %v816 = vpop.xlane.xlu0 %815
    %817 = vadd.xlane.f32.xlu0 %v775
    %v818 = vpop.xlane.xlu0 %817
    %819 = vadd.xlane.f32.xlu0 %v778
    %v820 = vpop.xlane.xlu0 %819
    %821 = vadd.xlane.f32.xlu0 %v783
    %v822 = vpop.xlane.xlu0 %821
    %823 = vadd.xlane.f32.xlu0 %v786
    %v824 = vpop.xlane.xlu0 %823
    %825 = vadd.xlane.f32.xlu0 %v791
    %v826 = vpop.xlane.xlu0 %825
    %827 = vadd.xlane.f32.xlu0 %v794
    %v828 = vpop.xlane.xlu0 %827
    %v829 = vmul.f32 %v798, 0.015625
    %v830 = vmul.f32 %v800, 0.015625
    %v831 = vmul.f32 %v802, 0.015625
    %v832 = vmul.f32 %v804, 0.015625
    %v833 = vmul.f32 %v806, 0.015625
    %v834 = vmul.f32 %v808, 0.015625
    %v835 = vmul.f32 %v810, 0.015625
    %v836 = vmul.f32 %v812, 0.015625
    %v837 = vmul.f32 %v814, 0.015625
    %v838 = vmul.f32 %v816, 0.015625
    %v839 = vmul.f32 %v818, 0.015625
    %v840 = vmul.f32 %v820, 0.015625
    %v841 = vmul.f32 %v822, 0.015625
    %v842 = vmul.f32 %v824, 0.015625
    %v843 = vmul.f32 %v826, 0.015625
    %v844 = vmul.f32 %v828, 0.015625
    %v845 = vsub.f32 %v735, %v829
    %v846 = vsub.f32 %v738, %v830
    %v847 = vsub.f32 %v743, %v831
    %v848 = vsub.f32 %v746, %v832
    %v849 = vsub.f32 %v751, %v833
    %v850 = vsub.f32 %v754, %v834
    %v851 = vsub.f32 %v759, %v835
    %v852 = vsub.f32 %v762, %v836
    %v853 = vsub.f32 %v767, %v837
    %v854 = vsub.f32 %v770, %v838
    %v855 = vsub.f32 %v775, %v839
    %v856 = vsub.f32 %v778, %v840
    %v857 = vsub.f32 %v783, %v841
    %v858 = vsub.f32 %v786, %v842
    %v859 = vsub.f32 %v791, %v843
    %v860 = vsub.f32 %v794, %v844
    %v861 = vmul.f32 %v845, %v845
    %v862 = vmul.f32 %v846, %v846
    %v863 = vmul.f32 %v847, %v847
    %v864 = vmul.f32 %v848, %v848
    %v865 = vmul.f32 %v849, %v849
    %v866 = vmul.f32 %v850, %v850
    %v867 = vmul.f32 %v851, %v851
    %v868 = vmul.f32 %v852, %v852
    %v869 = vmul.f32 %v853, %v853
    %v870 = vmul.f32 %v854, %v854
    %v871 = vmul.f32 %v855, %v855
    %v872 = vmul.f32 %v856, %v856
    %v873 = vmul.f32 %v857, %v857
    %v874 = vmul.f32 %v858, %v858
    %v875 = vmul.f32 %v859, %v859
    %v876 = vmul.f32 %v860, %v860
    %877 = vadd.xlane.f32.xlu0 %v861
    %v878 = vpop.xlane.xlu0 %877
    %879 = vadd.xlane.f32.xlu0 %v862
    %v880 = vpop.xlane.xlu0 %879
    %881 = vadd.xlane.f32.xlu0 %v863
    %v882 = vpop.xlane.xlu0 %881
    %883 = vadd.xlane.f32.xlu0 %v864
    %v884 = vpop.xlane.xlu0 %883
    %885 = vadd.xlane.f32.xlu0 %v865
    %v886 = vpop.xlane.xlu0 %885
    %887 = vadd.xlane.f32.xlu0 %v866
    %v888 = vpop.xlane.xlu0 %887
    %889 = vadd.xlane.f32.xlu0 %v867
    %v890 = vpop.xlane.xlu0 %889
    %891 = vadd.xlane.f32.xlu0 %v868
    %v892 = vpop.xlane.xlu0 %891
    %893 = vadd.xlane.f32.xlu0 %v869
    %v894 = vpop.xlane.xlu0 %893
    %895 = vadd.xlane.f32.xlu0 %v870
    %v896 = vpop.xlane.xlu0 %895
    %897 = vadd.xlane.f32.xlu0 %v871
    %v898 = vpop.xlane.xlu0 %897
    %899 = vadd.xlane.f32.xlu0 %v872
    %v900 = vpop.xlane.xlu0 %899
    %901 = vadd.xlane.f32.xlu0 %v873
    %v902 = vpop.xlane.xlu0 %901
    %903 = vadd.xlane.f32.xlu0 %v874
    %v904 = vpop.xlane.xlu0 %903
    %905 = vadd.xlane.f32.xlu0 %v875
    %v906 = vpop.xlane.xlu0 %905
    %907 = vadd.xlane.f32.xlu0 %v876
    %v908 = vpop.xlane.xlu0 %907
    %v909 = vmul.f32 %v829, %v829
    %v910 = vmul.f32 %v830, %v830
    %v911 = vmul.f32 %v831, %v831
    %v912 = vmul.f32 %v832, %v832
    %v913 = vmul.f32 %v833, %v833
    %v914 = vmul.f32 %v834, %v834
    %v915 = vmul.f32 %v835, %v835
    %v916 = vmul.f32 %v836, %v836
    %v917 = vmul.f32 %v837, %v837
    %v918 = vmul.f32 %v838, %v838
    %v919 = vmul.f32 %v839, %v839
    %v920 = vmul.f32 %v840, %v840
    %v921 = vmul.f32 %v841, %v841
    %v922 = vmul.f32 %v842, %v842
    %v923 = vmul.f32 %v843, %v843
    %v924 = vmul.f32 %v844, %v844
    %v925 = vmul.f32 %v909, 64.0
    %v926 = vmul.f32 %v910, 64.0
    %v927 = vmul.f32 %v911, 64.0
    %v928 = vmul.f32 %v912, 64.0
    %v929 = vmul.f32 %v913, 64.0
    %v930 = vmul.f32 %v914, 64.0
    %v931 = vmul.f32 %v915, 64.0
    %v932 = vmul.f32 %v916, 64.0
    %v933 = vmul.f32 %v917, 64.0
    %v934 = vmul.f32 %v918, 64.0
    %v935 = vmul.f32 %v919, 64.0
    %v936 = vmul.f32 %v920, 64.0
    %v937 = vmul.f32 %v921, 64.0
    %v938 = vmul.f32 %v922, 64.0
    %v939 = vmul.f32 %v923, 64.0
    %v940 = vmul.f32 %v924, 64.0
    %v941 = vsub.f32 %v878, %v925
    %v942 = vsub.f32 %v880, %v926
    %v943 = vsub.f32 %v882, %v927
    %v944 = vsub.f32 %v884, %v928
    %v945 = vsub.f32 %v886, %v929
    %v946 = vsub.f32 %v888, %v930
    %v947 = vsub.f32 %v890, %v931
    %v948 = vsub.f32 %v892, %v932
    %v949 = vsub.f32 %v894, %v933
    %v950 = vsub.f32 %v896, %v934
    %v951 = vsub.f32 %v898, %v935
    %v952 = vsub.f32 %v900, %v936
    %v953 = vsub.f32 %v902, %v937
    %v954 = vsub.f32 %v904, %v938
    %v955 = vsub.f32 %v906, %v939
    %v956 = vsub.f32 %v908, %v940
    %v957 = vmul.f32 %v941, 0.015625
    %v958 = vmul.f32 %v942, 0.015625
    %v959 = vmul.f32 %v943, 0.015625
    %v960 = vmul.f32 %v944, 0.015625
    %v961 = vmul.f32 %v945, 0.015625
    %v962 = vmul.f32 %v946, 0.015625
    %v963 = vmul.f32 %v947, 0.015625
    %v964 = vmul.f32 %v948, 0.015625
    %v965 = vmul.f32 %v949, 0.015625
    %v966 = vmul.f32 %v950, 0.015625
    %v967 = vmul.f32 %v951, 0.015625
    %v968 = vmul.f32 %v952, 0.015625
    %v969 = vmul.f32 %v953, 0.015625
    %v970 = vmul.f32 %v954, 0.015625
    %v971 = vmul.f32 %v955, 0.015625
    %v972 = vmul.f32 %v956, 0.015625
    %v973 = vadd.f32 %v957, 1e-05
    %v974 = vadd.f32 %v958, 1e-05
    %v975 = vadd.f32 %v959, 1e-05
    %v976 = vadd.f32 %v960, 1e-05
    %v977 = vadd.f32 %v961, 1e-05
    %v978 = vadd.f32 %v962, 1e-05
    %v979 = vadd.f32 %v963, 1e-05
    %v980 = vadd.f32 %v964, 1e-05
    %v981 = vadd.f32 %v965, 1e-05
    %v982 = vadd.f32 %v966, 1e-05
    %v983 = vadd.f32 %v967, 1e-05
    %v984 = vadd.f32 %v968, 1e-05
    %v985 = vadd.f32 %v969, 1e-05
    %v986 = vadd.f32 %v970, 1e-05
    %v987 = vadd.f32 %v971, 1e-05
    %v988 = vadd.f32 %v972, 1e-05
    %v989 = vrsqrt.pop %v973
    %v990 = vrsqrt.pop %v974
    %v991 = vrsqrt.pop %v975
    %v992 = vrsqrt.pop %v976
    %v993 = vrsqrt.pop %v977
    %v994 = vrsqrt.pop %v978
    %v995 = vrsqrt.pop %v979
    %v996 = vrsqrt.pop %v980
    %v997 = vrsqrt.pop %v981
    %v998 = vrsqrt.pop %v982
    %v999 = vrsqrt.pop %v983
    %v1000 = vrsqrt.pop %v984
    %v1001 = vrsqrt.pop %v985
    %v1002 = vrsqrt.pop %v986
    %v1003 = vrsqrt.pop %v987
    %v1004 = vrsqrt.pop %v988
    %v1005 = vmul.f32 %v845, %v989
    %v1006 = vmul.f32 %v846, %v990
    %v1007 = vmul.f32 %v847, %v991
    %v1008 = vmul.f32 %v848, %v992
    %v1009 = vmul.f32 %v849, %v993
    %v1010 = vmul.f32 %v850, %v994
    %v1011 = vmul.f32 %v851, %v995
    %v1012 = vmul.f32 %v852, %v996
    %v1013 = vmul.f32 %v853, %v997
    %v1014 = vmul.f32 %v854, %v998
    %v1015 = vmul.f32 %v855, %v999
    %v1016 = vmul.f32 %v856, %v1000
    %v1017 = vmul.f32 %v857, %v1001
    %v1018 = vmul.f32 %v858, %v1002
    %v1019 = vmul.f32 %v859, %v1003
    %v1020 = vmul.f32 %v860, %v1004
    %v1021 = vld [vmem:[%s3] sm:$0x1]
    %v1023 = vlaneseq
    %v1024 = vshrl.u32 %v1023, 7
    %v1025 = vsub.s32 0, %v1024
    %v1026 = vrot.slane %v1021, %v1025
    %v1028 = vmul.f32 %v1005, %v1026
    %v1029 = vmul.f32 %v1006, %v1026
    %v1030 = vmul.f32 %v1007, %v1026
    %v1031 = vmul.f32 %v1008, %v1026
    %v1032 = vmul.f32 %v1009, %v1026
    %v1033 = vmul.f32 %v1010, %v1026
    %v1034 = vmul.f32 %v1011, %v1026
    %v1035 = vmul.f32 %v1012, %v1026
    %v1036 = vmul.f32 %v1013, %v1026
    %v1037 = vmul.f32 %v1014, %v1026
    %v1038 = vmul.f32 %v1015, %v1026
    %v1039 = vmul.f32 %v1016, %v1026
    %v1040 = vmul.f32 %v1017, %v1026
    %v1041 = vmul.f32 %v1018, %v1026
    %v1042 = vmul.f32 %v1019, %v1026
    %v1043 = vmul.f32 %v1020, %v1026
    %v1044 = vld [vmem:[%s4] sm:$0x1]
    %v1046 = vlaneseq
    %v1047 = vshrl.u32 %v1046, 7
    %v1048 = vsub.s32 0, %v1047
    %v1049 = vrot.slane %v1044, %v1048
    %v1051 = vadd.f32 %v1028, %v1049
    %v1052 = vadd.f32 %v1029, %v1049
    %v1053 = vadd.f32 %v1030, %v1049
    %v1054 = vadd.f32 %v1031, %v1049
    %v1055 = vadd.f32 %v1032, %v1049
    %v1056 = vadd.f32 %v1033, %v1049
    %v1057 = vadd.f32 %v1034, %v1049
    %v1058 = vadd.f32 %v1035, %v1049
    %v1059 = vadd.f32 %v1036, %v1049
    %v1060 = vadd.f32 %v1037, %v1049
    %v1061 = vadd.f32 %v1038, %v1049
    %v1062 = vadd.f32 %v1039, %v1049
    %v1063 = vadd.f32 %v1040, %v1049
    %v1064 = vadd.f32 %v1041, %v1049
    %v1065 = vadd.f32 %v1042, %v1049
    %v1066 = vadd.f32 %v1043, %v1049
    %v1067 = vxor.u32 %v1051, 2147483648
    %v1068 = vxor.u32 %v1052, 2147483648
    %v1069 = vxor.u32 %v1053, 2147483648
    %v1070 = vxor.u32 %v1054, 2147483648
    %v1071 = vxor.u32 %v1055, 2147483648
    %v1072 = vxor.u32 %v1056, 2147483648
    %v1073 = vxor.u32 %v1057, 2147483648
    %v1074 = vxor.u32 %v1058, 2147483648
    %v1075 = vxor.u32 %v1059, 2147483648
    %v1076 = vxor.u32 %v1060, 2147483648
    %v1077 = vxor.u32 %v1061, 2147483648
    %v1078 = vxor.u32 %v1062, 2147483648
    %v1079 = vxor.u32 %v1063, 2147483648
    %v1080 = vxor.u32 %v1064, 2147483648
    %v1081 = vxor.u32 %v1065, 2147483648
    %v1082 = vxor.u32 %v1066, 2147483648
    %v1083 = vmul.f32 %v1067, 1.442695
    %v1084 = vpow.pop %v1083
    %v1085 = vmul.f32 %v1068, 1.442695
    %v1086 = vpow.pop %v1085
    %v1087 = vmul.f32 %v1069, 1.442695
    %v1088 = vpow.pop %v1087
    %v1089 = vmul.f32 %v1070, 1.442695
    %v1090 = vpow.pop %v1089
    %v1091 = vmul.f32 %v1071, 1.442695
    %v1092 = vpow.pop %v1091
    %v1093 = vmul.f32 %v1072, 1.442695
    %v1094 = vpow.pop %v1093
    %v1095 = vmul.f32 %v1073, 1.442695
    %v1096 = vpow.pop %v1095
    %v1097 = vmul.f32 %v1074, 1.442695
    %v1098 = vpow.pop %v1097
    %v1099 = vmul.f32 %v1075, 1.442695
    %v1100 = vpow.pop %v1099
    %v1101 = vmul.f32 %v1076, 1.442695
    %v1102 = vpow.pop %v1101
    %v1103 = vmul.f32 %v1077, 1.442695
    %v1104 = vpow.pop %v1103
    %v1105 = vmul.f32 %v1078, 1.442695
    %v1106 = vpow.pop %v1105
    %v1107 = vmul.f32 %v1079, 1.442695
    %v1108 = vpow.pop %v1107
    %v1109 = vmul.f32 %v1080, 1.442695
    %v1110 = vpow.pop %v1109
    %v1111 = vmul.f32 %v1081, 1.442695
    %v1112 = vpow.pop %v1111
    %v1113 = vmul.f32 %v1082, 1.442695
    %v1114 = vpow.pop %v1113
    %v1115 = vadd.f32 %v1084, 1.0
    %v1116 = vadd.f32 %v1086, 1.0
    %v1117 = vadd.f32 %v1088, 1.0
    %v1118 = vadd.f32 %v1090, 1.0
    %v1119 = vadd.f32 %v1092, 1.0
    %v1120 = vadd.f32 %v1094, 1.0
    %v1121 = vadd.f32 %v1096, 1.0
    %v1122 = vadd.f32 %v1098, 1.0
    %v1123 = vadd.f32 %v1100, 1.0
    %v1124 = vadd.f32 %v1102, 1.0
    %v1125 = vadd.f32 %v1104, 1.0
    %v1126 = vadd.f32 %v1106, 1.0
    %v1127 = vadd.f32 %v1108, 1.0
    %v1128 = vadd.f32 %v1110, 1.0
    %v1129 = vadd.f32 %v1112, 1.0
    %v1130 = vadd.f32 %v1114, 1.0
    %v1131 = vrcp.pop %v1115
    %v1132 = vmul.f32 1.0, %v1131
    %v1133 = vrcp.pop %v1116
    %v1134 = vmul.f32 1.0, %v1133
    %v1135 = vrcp.pop %v1117
    %v1136 = vmul.f32 1.0, %v1135
    %v1137 = vrcp.pop %v1118
    %v1138 = vmul.f32 1.0, %v1137
    %v1139 = vrcp.pop %v1119
    %v1140 = vmul.f32 1.0, %v1139
    %v1141 = vrcp.pop %v1120
    %v1142 = vmul.f32 1.0, %v1141
    %v1143 = vrcp.pop %v1121
    %v1144 = vmul.f32 1.0, %v1143
    %v1145 = vrcp.pop %v1122
    %v1146 = vmul.f32 1.0, %v1145
    %v1147 = vrcp.pop %v1123
    %v1148 = vmul.f32 1.0, %v1147
    %v1149 = vrcp.pop %v1124
    %v1150 = vmul.f32 1.0, %v1149
    %v1151 = vrcp.pop %v1125
    %v1152 = vmul.f32 1.0, %v1151
    %v1153 = vrcp.pop %v1126
    %v1154 = vmul.f32 1.0, %v1153
    %v1155 = vrcp.pop %v1127
    %v1156 = vmul.f32 1.0, %v1155
    %v1157 = vrcp.pop %v1128
    %v1158 = vmul.f32 1.0, %v1157
    %v1159 = vrcp.pop %v1129
    %v1160 = vmul.f32 1.0, %v1159
    %v1161 = vrcp.pop %v1130
    %v1162 = vmul.f32 1.0, %v1161
    %v1163 = vmul.f32 %v1051, %v1132
    %v1164 = vmul.f32 %v1052, %v1134
    %v1165 = vmul.f32 %v1053, %v1136
    %v1166 = vmul.f32 %v1054, %v1138
    %v1167 = vmul.f32 %v1055, %v1140
    %v1168 = vmul.f32 %v1056, %v1142
    %v1169 = vmul.f32 %v1057, %v1144
    %v1170 = vmul.f32 %v1058, %v1146
    %v1171 = vmul.f32 %v1059, %v1148
    %v1172 = vmul.f32 %v1060, %v1150
    %v1173 = vmul.f32 %v1061, %v1152
    %v1174 = vmul.f32 %v1062, %v1154
    %v1175 = vmul.f32 %v1063, %v1156
    %v1176 = vmul.f32 %v1064, %v1158
    %v1177 = vmul.f32 %v1065, %v1160
    %v1178 = vmul.f32 %v1066, %v1162
    %1179 = vst [vmem:[%s5] sm:$0xff] %v1163
    %1180 = vst [vmem:[%s5 + $0x8] sm:$0xff] %v1164
    %1181 = vst [vmem:[%s5 + $0x10] sm:$0xff] %v1165
    %1182 = vst [vmem:[%s5 + $0x18] sm:$0xff] %v1166
    %1183 = vst [vmem:[%s5 + $0x20] sm:$0xff] %v1167
    %1184 = vst [vmem:[%s5 + $0x28] sm:$0xff] %v1168
    %1185 = vst [vmem:[%s5 + $0x30] sm:$0xff] %v1169
    %1186 = vst [vmem:[%s5 + $0x38] sm:$0xff] %v1170
    %1187 = vst [vmem:[%s5 + $0x40] sm:$0xff] %v1171
    %1188 = vst [vmem:[%s5 + $0x48] sm:$0xff] %v1172
    %1189 = vst [vmem:[%s5 + $0x50] sm:$0xff] %v1173
    %1190 = vst [vmem:[%s5 + $0x58] sm:$0xff] %v1174
    %1191 = vst [vmem:[%s5 + $0x60] sm:$0xff] %v1175
    %1192 = vst [vmem:[%s5 + $0x68] sm:$0xff] %v1176
    %1193 = vst [vmem:[%s5 + $0x70] sm:$0xff] %v1177
    %1194 = vst [vmem:[%s5 + $0x78] sm:$0xff] %v1178
    %v1195 = vlaneseq
    %v1196 = vand.u32 %v1195, 127
    %vm1197 = vcmp.lt.s32.totalorder %v1196, 64
    %v1198 = vsel %vm1197, %v1163, inf
    %v1199 = vsel %vm1197, %v1164, inf
    %v1200 = vsel %vm1197, %v1165, inf
    %v1201 = vsel %vm1197, %v1166, inf
    %v1202 = vsel %vm1197, %v1167, inf
    %v1203 = vsel %vm1197, %v1168, inf
    %v1204 = vsel %vm1197, %v1169, inf
    %v1205 = vsel %vm1197, %v1170, inf
    %v1206 = vsel %vm1197, %v1171, inf
    %v1207 = vsel %vm1197, %v1172, inf
    %v1208 = vsel %vm1197, %v1173, inf
    %v1209 = vsel %vm1197, %v1174, inf
    %v1210 = vsel %vm1197, %v1175, inf
    %v1211 = vsel %vm1197, %v1176, inf
    %v1212 = vsel %vm1197, %v1177, inf
    %v1213 = vsel %vm1197, %v1178, inf
    %v1214 = vmin.f32 %v1198, %v1202
    %v1215 = vmin.f32 %v1199, %v1203
    %v1216 = vmin.f32 %v1200, %v1204
    %v1217 = vmin.f32 %v1201, %v1205
    %v1218 = vmin.f32 %v1214, %v1206
    %v1219 = vmin.f32 %v1215, %v1207
    %v1220 = vmin.f32 %v1216, %v1208
    %v1221 = vmin.f32 %v1217, %v1209
    %v1222 = vmin.f32 %v1218, %v1210
    %v1223 = vmin.f32 %v1219, %v1211
    %v1224 = vmin.f32 %v1220, %v1212
    %v1225 = vmin.f32 %v1221, %v1213
    %v1226 = vmin.f32 %v1222, %v1223
    %v1227 = vmin.f32 %v1224, %v1225
    %v1228 = vmin.f32 %v1226, %v1227
    %1229 = vmin.xlane.f32.xlu0 %v1228
    %v1230 = vpop.xlane.xlu0 %1229
    %v1231 = vrot.slane %v1230, 4
    %v1232 = vmin.f32 %v1230, %v1231
    %v1233 = vrot.slane %v1232, 2
    %v1234 = vmin.f32 %v1232, %v1233
    %v1235 = vrot.slane %v1234, 1
    %v1236 = vmin.f32 %v1234, %v1235
    %s1237 = vtos %v1236
    %v1238 = vsel %vm1197, %v1163, -inf
    %v1239 = vsel %vm1197, %v1164, -inf
    %v1240 = vsel %vm1197, %v1165, -inf
    %v1241 = vsel %vm1197, %v1166, -inf
    %v1242 = vsel %vm1197, %v1167, -inf
    %v1243 = vsel %vm1197, %v1168, -inf
    %v1244 = vsel %vm1197, %v1169, -inf
    %v1245 = vsel %vm1197, %v1170, -inf
    %v1246 = vsel %vm1197, %v1171, -inf
    %v1247 = vsel %vm1197, %v1172, -inf
    %v1248 = vsel %vm1197, %v1173, -inf
    %v1249 = vsel %vm1197, %v1174, -inf
    %v1250 = vsel %vm1197, %v1175, -inf
    %v1251 = vsel %vm1197, %v1176, -inf
    %v1252 = vsel %vm1197, %v1177, -inf
    %v1253 = vsel %vm1197, %v1178, -inf
    %v1254 = vmax.f32 %v1238, %v1242
    %v1255 = vmax.f32 %v1239, %v1243
    %v1256 = vmax.f32 %v1240, %v1244
    %v1257 = vmax.f32 %v1241, %v1245
    %v1258 = vmax.f32 %v1254, %v1246
    %v1259 = vmax.f32 %v1255, %v1247
    %v1260 = vmax.f32 %v1256, %v1248
    %v1261 = vmax.f32 %v1257, %v1249
    %v1262 = vmax.f32 %v1258, %v1250
    %v1263 = vmax.f32 %v1259, %v1251
    %v1264 = vmax.f32 %v1260, %v1252
    %v1265 = vmax.f32 %v1261, %v1253
    %v1266 = vmax.f32 %v1262, %v1263
    %v1267 = vmax.f32 %v1264, %v1265
    %v1268 = vmax.f32 %v1266, %v1267
    %1269 = vmax.xlane.f32.xlu0 %v1268
    %v1270 = vpop.xlane.xlu0 %1269
    %v1271 = vrot.slane %v1270, 4
    %v1272 = vmax.f32 %v1270, %v1271
    %v1273 = vrot.slane %v1272, 2
    %v1274 = vmax.f32 %v1272, %v1273
    %v1275 = vrot.slane %v1274, 1
    %v1276 = vmax.f32 %v1274, %v1275
    %s1277 = vtos %v1276
    %v1278 = vstv %s1237
    %1279 = vst [vmem:[%s6] sm:$0xff] %v1278
    %v1280 = vstv %s1277
    %1281 = vst [vmem:[%s7] sm:$0xff] %v1280
    // Predicated region
    $region26: #{_lambda_.2} parent=1 // pred_check
      _
    $region27: #{_lambda_.2} parent=1 // pred_check_branch
      %1283 = sbr.rel (0) target = $region29
    $region28: #{_lambda_.2} parent=1 // pred_region
      _
    $region29: #{_lambda_.2} parent=1 // pred_fallthru
      _
    // Predicated region
    $region30: #{_lambda_.2} parent=1 // pred_check
      _
    $region31: #{_lambda_.2} parent=1 // pred_check_branch
      %1285 = sbr.rel (0) target = $region33
    $region32: #{_lambda_.2} parent=1 // pred_region
      _
    $region33: #{_lambda_.2} parent=1 // pred_fallthru
      _
    // Predicated region
    $region34: #{_lambda_.2} parent=1 // pred_check
      _
    $region35: #{_lambda_.2} parent=1 // pred_check_branch
      %1287 = sbr.rel (0) target = $region37
    $region36: #{_lambda_.2} parent=1 // pred_region
      _
    $region37: #{_lambda_.2} parent=1 // pred_fallthru
      _
    // Predicated region
    $region38: #{_lambda_.2} parent=1 // pred_check
      _
    $region39: #{_lambda_.2} parent=1 // pred_check_branch
      %1289 = sbr.rel (0) target = $region41
    $region40: #{_lambda_.2} parent=1 // pred_region
      _
    $region41: #{_lambda_.2} parent=1 // pred_fallthru
      _
    // Predicated region
    $region42: #{_lambda_.2} parent=1 // pred_check
      _
    $region43: #{_lambda_.2} parent=1 // pred_check_branch
      %1291 = sbr.rel (0) target = $region45
    $region44: #{_lambda_.2} parent=1 // pred_region
      _
    $region45: #{_lambda_.2} parent=1 // pred_fallthru
      _
    // Predicated region
    $region46: #{_lambda_.2} parent=1 // pred_check
      _
    $region47: #{_lambda_.2} parent=1 // pred_check_branch
      %1293 = sbr.rel (0) target = $region49
    $region48: #{_lambda_.2} parent=1 // pred_region
      _
    $region49: #{_lambda_.2} parent=1 // pred_fallthru
      _
    %1294 = vsyncpa [#allocation3], 1

// kernel: _lambda_.3
$region0: #{_lambda_.3}
  #allocation0 [shape = 'u32[]', space=smem, size = 0x4, offset = 0x4, fixed_abs, tag = 'smem constant byte address 0x4 - core index']
  #allocation1 [shape = 'u32[144,128]{1,0:T(1,128)}', space=vmem, size = 0x12000, scoped, tag = 'internal scratch']
  %s0 = inlined_call_operand.vmem [shape: f32[2], index: 0, kind: input, shape index: {}]
  %s1 = inlined_call_operand.vmem [shape: f32[128,64], index: 1, kind: input, shape index: {}]
  %s2 = inlined_call_operand.vmem [shape: bf16[384,128], index: 2, kind: input, shape index: {}]
  %s3 = inlined_call_operand.vmem [shape: f32[1,128], index: 3, kind: input, shape index: {}]
  %s4 = inlined_call_operand.vmem [shape: f32[1,128], index: 4, kind: input, shape index: {}]
  %s5 = inlined_call_operand.vmem [shape: f32[128,128], index: 5, kind: output, shape index: {0}]
  %s6 = inlined_call_operand.hbm [shape: f32[8,128], index: 6, kind: output, shape index: {1}]
  %s7 = inlined_call_operand.hbm [shape: f32[8,128], index: 7, kind: output, shape index: {2}]
  %8 = xla_tuple %s5, %s6, %s7
  %s9 = sld [smem:[#allocation0]]
  $region50: #{_lambda_.3} parent=0
    _
  %s11 = ssub.s32 1, %s9
  %s12 = scalar_select 0, %s11, %s9
  $region1: #{_lambda_.3} parent=0
    #allocation2 [shape = 'u8[512]{0}', space=smem, size = 0x200, scoped, tag = 'input window, operand 0, single buffered']
    #allocation3 [shape = 's32[1]{0}', space=sflag, size = 0x4, scoped, tag = 'scoped memory for _lambda_.3']
    #allocation4 [shape = 's32[1]{0}', space=sflag, size = 0x4, scoped, tag = 'scoped memory for _lambda_.3']
    #allocation5 [shape = 'u8[4096]{0}', space=vmem, size = 0x1000, scoped, tag = 'output window, operand 1, single buffered']
    #allocation6 [shape = 'u8[4096]{0}', space=vmem, size = 0x1000, scoped, tag = 'output window, operand 2, single buffered']
    #allocation7 [shape = 's32[1]{0}', space=sflag, size = 0x4, scoped, tag = 'scoped memory for _lambda_.3']
    %13 = vsyncpa [#allocation4], 0
    %14 = vsyncpa [#allocation3], 0
    %15 = vsyncpa [#allocation7], 0
    // Predicated region
    $region2: #{_lambda_.3} parent=1 // pred_check
      _
    $region3: #{_lambda_.3} parent=1 // pred_check_branch
      %17 = sbr.rel (0) target = $region5
    $region4: #{_lambda_.3} parent=1 // pred_region
      %s19 = ssub.s32 16, 16
      %20 = vsyncadd [#allocation4], %s19
      %s22 = sshll.u32 %s0, 4
      %s23 = int_to_ptr.vmem [resolvable:$true] %s22
      %25 = dma.vmem_to_smem %s23, 16, [#allocation2], [#allocation4]
    $region5: #{_lambda_.3} parent=1 // pred_fallthru
      _
    // Predicated region
    $region6: #{_lambda_.3} parent=1 // pred_check
      _
    $region7: #{_lambda_.3} parent=1 // pred_check_branch
      %27 = sbr.rel (0) target = $region9
    $region8: #{_lambda_.3} parent=1 // pred_region
      _
    $region9: #{_lambda_.3} parent=1 // pred_fallthru
      _
    // Predicated region
    $region10: #{_lambda_.3} parent=1 // pred_check
      _
    $region11: #{_lambda_.3} parent=1 // pred_check_branch
      %29 = sbr.rel (0) target = $region13
    $region12: #{_lambda_.3} parent=1 // pred_region
      _
    $region13: #{_lambda_.3} parent=1 // pred_fallthru
      _
    // Predicated region
    $region14: #{_lambda_.3} parent=1 // pred_check
      _
    $region15: #{_lambda_.3} parent=1 // pred_check_branch
      %31 = sbr.rel (0) target = $region17
    $region16: #{_lambda_.3} parent=1 // pred_region
      _
    $region17: #{_lambda_.3} parent=1 // pred_fallthru
      _
    // Predicated region
    $region18: #{_lambda_.3} parent=1 // pred_check
      _
    $region19: #{_lambda_.3} parent=1 // pred_check_branch
      %33 = sbr.rel (0) target = $region21
    $region20: #{_lambda_.3} parent=1 // pred_region
      _
    $region21: #{_lambda_.3} parent=1 // pred_fallthru
      _
    // Predicated region
    $region22: #{_lambda_.3} parent=1 // pred_check
      _
    $region23: #{_lambda_.3} parent=1 // pred_check_branch
      %35 = sbr.rel (0) target = $region25
    $region24: #{_lambda_.3} parent=1 // pred_region
      %36 = dma.done [#allocation4], 16
    $region25: #{_lambda_.3} parent=1 // pred_fallthru
      _
    %37 = sfence
    %v39 = vld [vmem:[%s1] sm:$0xff]
    %v40 = vld [vmem:[%s1 + $0x8] sm:$0xff]
    %v41 = vld [vmem:[%s1 + $0x10] sm:$0xff]
    %v42 = vld [vmem:[%s1 + $0x18] sm:$0xff]
    %v43 = vld [vmem:[%s1 + $0x20] sm:$0xff]
    %v44 = vld [vmem:[%s1 + $0x28] sm:$0xff]
    %v45 = vld [vmem:[%s1 + $0x30] sm:$0xff]
    %v46 = vld [vmem:[%s1 + $0x38] sm:$0xff]
    %v47 = vld [vmem:[%s1 + $0x40] sm:$0xff]
    %v48 = vld [vmem:[%s1 + $0x48] sm:$0xff]
    %v49 = vld [vmem:[%s1 + $0x50] sm:$0xff]
    %v50 = vld [vmem:[%s1 + $0x58] sm:$0xff]
    %v51 = vld [vmem:[%s1 + $0x60] sm:$0xff]
    %v52 = vld [vmem:[%s1 + $0x68] sm:$0xff]
    %v53 = vld [vmem:[%s1 + $0x70] sm:$0xff]
    %v54 = vld [vmem:[%s1 + $0x78] sm:$0xff]
    %s55 = sld [smem:[#allocation2]]
    %s56 = sld [smem:[#allocation2 + $0x1]]
    %v57 = vxor.u32 %v39, 2147483648
    %v58 = vxor.u32 %v40, 2147483648
    %v59 = vxor.u32 %v41, 2147483648
    %v60 = vxor.u32 %v42, 2147483648
    %v61 = vxor.u32 %v43, 2147483648
    %v62 = vxor.u32 %v44, 2147483648
    %v63 = vxor.u32 %v45, 2147483648
    %v64 = vxor.u32 %v46, 2147483648
    %v65 = vxor.u32 %v47, 2147483648
    %v66 = vxor.u32 %v48, 2147483648
    %v67 = vxor.u32 %v49, 2147483648
    %v68 = vxor.u32 %v50, 2147483648
    %v69 = vxor.u32 %v51, 2147483648
    %v70 = vxor.u32 %v52, 2147483648
    %v71 = vxor.u32 %v53, 2147483648
    %v72 = vxor.u32 %v54, 2147483648
    %v73 = vmul.f32 %v57, 1.442695
    %v74 = vpow.pop %v73
    %v75 = vmul.f32 %v58, 1.442695
    %v76 = vpow.pop %v75
    %v77 = vmul.f32 %v59, 1.442695
    %v78 = vpow.pop %v77
    %v79 = vmul.f32 %v60, 1.442695
    %v80 = vpow.pop %v79
    %v81 = vmul.f32 %v61, 1.442695
    %v82 = vpow.pop %v81
    %v83 = vmul.f32 %v62, 1.442695
    %v84 = vpow.pop %v83
    %v85 = vmul.f32 %v63, 1.442695
    %v86 = vpow.pop %v85
    %v87 = vmul.f32 %v64, 1.442695
    %v88 = vpow.pop %v87
    %v89 = vmul.f32 %v65, 1.442695
    %v90 = vpow.pop %v89
    %v91 = vmul.f32 %v66, 1.442695
    %v92 = vpow.pop %v91
    %v93 = vmul.f32 %v67, 1.442695
    %v94 = vpow.pop %v93
    %v95 = vmul.f32 %v68, 1.442695
    %v96 = vpow.pop %v95
    %v97 = vmul.f32 %v69, 1.442695
    %v98 = vpow.pop %v97
    %v99 = vmul.f32 %v70, 1.442695
    %v100 = vpow.pop %v99
    %v101 = vmul.f32 %v71, 1.442695
    %v102 = vpow.pop %v101
    %v103 = vmul.f32 %v72, 1.442695
    %v104 = vpow.pop %v103
    %v105 = vadd.f32 %v74, 1.0
    %v106 = vadd.f32 %v76, 1.0
    %v107 = vadd.f32 %v78, 1.0
    %v108 = vadd.f32 %v80, 1.0
    %v109 = vadd.f32 %v82, 1.0
    %v110 = vadd.f32 %v84, 1.0
    %v111 = vadd.f32 %v86, 1.0
    %v112 = vadd.f32 %v88, 1.0
    %v113 = vadd.f32 %v90, 1.0
    %v114 = vadd.f32 %v92, 1.0
    %v115 = vadd.f32 %v94, 1.0
    %v116 = vadd.f32 %v96, 1.0
    %v117 = vadd.f32 %v98, 1.0
    %v118 = vadd.f32 %v100, 1.0
    %v119 = vadd.f32 %v102, 1.0
    %v120 = vadd.f32 %v104, 1.0
    %v121 = vrcp.pop %v105
    %v122 = vmul.f32 1.0, %v121
    %v123 = vrcp.pop %v106
    %v124 = vmul.f32 1.0, %v123
    %v125 = vrcp.pop %v107
    %v126 = vmul.f32 1.0, %v125
    %v127 = vrcp.pop %v108
    %v128 = vmul.f32 1.0, %v127
    %v129 = vrcp.pop %v109
    %v130 = vmul.f32 1.0, %v129
    %v131 = vrcp.pop %v110
    %v132 = vmul.f32 1.0, %v131
    %v133 = vrcp.pop %v111
    %v134 = vmul.f32 1.0, %v133
    %v135 = vrcp.pop %v112
    %v136 = vmul.f32 1.0, %v135
    %v137 = vrcp.pop %v113
    %v138 = vmul.f32 1.0, %v137
    %v139 = vrcp.pop %v114
    %v140 = vmul.f32 1.0, %v139
    %v141 = vrcp.pop %v115
    %v142 = vmul.f32 1.0, %v141
    %v143 = vrcp.pop %v116
    %v144 = vmul.f32 1.0, %v143
    %v145 = vrcp.pop %v117
    %v146 = vmul.f32 1.0, %v145
    %v147 = vrcp.pop %v118
    %v148 = vmul.f32 1.0, %v147
    %v149 = vrcp.pop %v119
    %v150 = vmul.f32 1.0, %v149
    %v151 = vrcp.pop %v120
    %v152 = vmul.f32 1.0, %v151
    %v153 = vmul.f32 %v39, %v122
    %v154 = vmul.f32 %v40, %v124
    %v155 = vmul.f32 %v41, %v126
    %v156 = vmul.f32 %v42, %v128
    %v157 = vmul.f32 %v43, %v130
    %v158 = vmul.f32 %v44, %v132
    %v159 = vmul.f32 %v45, %v134
    %v160 = vmul.f32 %v46, %v136
    %v161 = vmul.f32 %v47, %v138
    %v162 = vmul.f32 %v48, %v140
    %v163 = vmul.f32 %v49, %v142
    %v164 = vmul.f32 %v50, %v144
    %v165 = vmul.f32 %v51, %v146
    %v166 = vmul.f32 %v52, %v148
    %v167 = vmul.f32 %v53, %v150
    %v168 = vmul.f32 %v54, %v152
    %v169 = vstv %s55
    %v170 = vsub.f32 %v39, %v169
    %v171 = vsub.f32 %v40, %v169
    %v172 = vsub.f32 %v41, %v169
    %v173 = vsub.f32 %v42, %v169
    %v174 = vsub.f32 %v43, %v169
    %v175 = vsub.f32 %v44, %v169
    %v176 = vsub.f32 %v45, %v169
    %v177 = vsub.f32 %v46, %v169
    %v178 = vsub.f32 %v47, %v169
    %v179 = vsub.f32 %v48, %v169
    %v180 = vsub.f32 %v49, %v169
    %v181 = vsub.f32 %v50, %v169
    %v182 = vsub.f32 %v51, %v169
    %v183 = vsub.f32 %v52, %v169
    %v184 = vsub.f32 %v53, %v169
    %v185 = vsub.f32 %v54, %v169
    %v186 = vstv %s56
    %v187 = vmul.f32 %v170, %v186
    %v188 = vmul.f32 %v171, %v186
    %v189 = vmul.f32 %v172, %v186
    %v190 = vmul.f32 %v173, %v186
    %v191 = vmul.f32 %v174, %v186
    %v192 = vmul.f32 %v175, %v186
    %v193 = vmul.f32 %v176, %v186
    %v194 = vmul.f32 %v177, %v186
    %v195 = vmul.f32 %v178, %v186
    %v196 = vmul.f32 %v179, %v186
    %v197 = vmul.f32 %v180, %v186
    %v198 = vmul.f32 %v181, %v186
    %v199 = vmul.f32 %v182, %v186
    %v200 = vmul.f32 %v183, %v186
    %v201 = vmul.f32 %v184, %v186
    %v202 = vmul.f32 %v185, %v186
    %v203 = vsub.f32 %v187, 1.0
    %v204 = vsub.f32 %v188, 1.0
    %v205 = vsub.f32 %v189, 1.0
    %v206 = vsub.f32 %v190, 1.0
    %v207 = vsub.f32 %v191, 1.0
    %v208 = vsub.f32 %v192, 1.0
    %v209 = vsub.f32 %v193, 1.0
    %v210 = vsub.f32 %v194, 1.0
    %v211 = vsub.f32 %v195, 1.0
    %v212 = vsub.f32 %v196, 1.0
    %v213 = vsub.f32 %v197, 1.0
    %v214 = vsub.f32 %v198, 1.0
    %v215 = vsub.f32 %v199, 1.0
    %v216 = vsub.f32 %v200, 1.0
    %v217 = vsub.f32 %v201, 1.0
    %v218 = vsub.f32 %v202, 1.0
    %v219 = vmul.f32 %v203, 3.0
    %v220 = vmul.f32 %v204, 3.0
    %v221 = vmul.f32 %v205, 3.0
    %v222 = vmul.f32 %v206, 3.0
    %v223 = vmul.f32 %v207, 3.0
    %v224 = vmul.f32 %v208, 3.0
    %v225 = vmul.f32 %v209, 3.0
    %v226 = vmul.f32 %v210, 3.0
    %v227 = vmul.f32 %v211, 3.0
    %v228 = vmul.f32 %v212, 3.0
    %v229 = vmul.f32 %v213, 3.0
    %v230 = vmul.f32 %v214, 3.0
    %v231 = vmul.f32 %v215, 3.0
    %v232 = vmul.f32 %v216, 3.0
    %v233 = vmul.f32 %v217, 3.0
    %v234 = vmul.f32 %v218, 3.0
    %v235 = vmul.f32 %v219, %v203
    %v236 = vmul.f32 %v220, %v204
    %v237 = vmul.f32 %v221, %v205
    %v238 = vmul.f32 %v222, %v206
    %v239 = vmul.f32 %v223, %v207
    %v240 = vmul.f32 %v224, %v208
    %v241 = vmul.f32 %v225, %v209
    %v242 = vmul.f32 %v226, %v210
    %v243 = vmul.f32 %v227, %v211
    %v244 = vmul.f32 %v228, %v212
    %v245 = vmul.f32 %v229, %v213
    %v246 = vmul.f32 %v230, %v214
    %v247 = vmul.f32 %v231, %v215
    %v248 = vmul.f32 %v232, %v216
    %v249 = vmul.f32 %v233, %v217
    %v250 = vmul.f32 %v234, %v218
    %v251 = vsub.f32 %v235, 1.0
    %v252 = vsub.f32 %v236, 1.0
    %v253 = vsub.f32 %v237, 1.0
    %v254 = vsub.f32 %v238, 1.0
    %v255 = vsub.f32 %v239, 1.0
    %v256 = vsub.f32 %v240, 1.0
    %v257 = vsub.f32 %v241, 1.0
    %v258 = vsub.f32 %v242, 1.0
    %v259 = vsub.f32 %v243, 1.0
    %v260 = vsub.f32 %v244, 1.0
    %v261 = vsub.f32 %v245, 1.0
    %v262 = vsub.f32 %v246, 1.0
    %v263 = vsub.f32 %v247, 1.0
    %v264 = vsub.f32 %v248, 1.0
    %v265 = vsub.f32 %v249, 1.0
    %v266 = vsub.f32 %v250, 1.0
    %v267 = vmul.f32 %v251, 0.5
    %v268 = vmul.f32 %v252, 0.5
    %v269 = vmul.f32 %v253, 0.5
    %v270 = vmul.f32 %v254, 0.5
    %v271 = vmul.f32 %v255, 0.5
    %v272 = vmul.f32 %v256, 0.5
    %v273 = vmul.f32 %v257, 0.5
    %v274 = vmul.f32 %v258, 0.5
    %v275 = vmul.f32 %v259, 0.5
    %v276 = vmul.f32 %v260, 0.5
    %v277 = vmul.f32 %v261, 0.5
    %v278 = vmul.f32 %v262, 0.5
    %v279 = vmul.f32 %v263, 0.5
    %v280 = vmul.f32 %v264, 0.5
    %v281 = vmul.f32 %v265, 0.5
    %v282 = vmul.f32 %v266, 0.5
    %v283 = vmul.f32 %v203, 5.0
    %v284 = vmul.f32 %v204, 5.0
    %v285 = vmul.f32 %v205, 5.0
    %v286 = vmul.f32 %v206, 5.0
    %v287 = vmul.f32 %v207, 5.0
    %v288 = vmul.f32 %v208, 5.0
    %v289 = vmul.f32 %v209, 5.0
    %v290 = vmul.f32 %v210, 5.0
    %v291 = vmul.f32 %v211, 5.0
    %v292 = vmul.f32 %v212, 5.0
    %v293 = vmul.f32 %v213, 5.0
    %v294 = vmul.f32 %v214, 5.0
    %v295 = vmul.f32 %v215, 5.0
    %v296 = vmul.f32 %v216, 5.0
    %v297 = vmul.f32 %v217, 5.0
    %v298 = vmul.f32 %v218, 5.0
    %v299 = vmul.f32 %v283, %v267
    %v300 = vmul.f32 %v284, %v268
    %v301 = vmul.f32 %v285, %v269
    %v302 = vmul.f32 %v286, %v270
    %v303 = vmul.f32 %v287, %v271
    %v304 = vmul.f32 %v288, %v272
    %v305 = vmul.f32 %v289, %v273
    %v306 = vmul.f32 %v290, %v274
    %v307 = vmul.f32 %v291, %v275
    %v308 = vmul.f32 %v292, %v276
    %v309 = vmul.f32 %v293, %v277
    %v310 = vmul.f32 %v294, %v278
    %v311 = vmul.f32 %v295, %v279
    %v312 = vmul.f32 %v296, %v280
    %v313 = vmul.f32 %v297, %v281
    %v314 = vmul.f32 %v298, %v282
    %v315 = vmul.f32 %v203, 2.0
    %v316 = vmul.f32 %v204, 2.0
    %v317 = vmul.f32 %v205, 2.0
    %v318 = vmul.f32 %v206, 2.0
    %v319 = vmul.f32 %v207, 2.0
    %v320 = vmul.f32 %v208, 2.0
    %v321 = vmul.f32 %v209, 2.0
    %v322 = vmul.f32 %v210, 2.0
    %v323 = vmul.f32 %v211, 2.0
    %v324 = vmul.f32 %v212, 2.0
    %v325 = vmul.f32 %v213, 2.0
    %v326 = vmul.f32 %v214, 2.0
    %v327 = vmul.f32 %v215, 2.0
    %v328 = vmul.f32 %v216, 2.0
    %v329 = vmul.f32 %v217, 2.0
    %v330 = vmul.f32 %v218, 2.0
    %v331 = vsub.f32 %v299, %v315
    %v332 = vsub.f32 %v300, %v316
    %v333 = vsub.f32 %v301, %v317
    %v334 = vsub.f32 %v302, %v318
    %v335 = vsub.f32 %v303, %v319
    %v336 = vsub.f32 %v304, %v320
    %v337 = vsub.f32 %v305, %v321
    %v338 = vsub.f32 %v306, %v322
    %v339 = vsub.f32 %v307, %v323
    %v340 = vsub.f32 %v308, %v324
    %v341 = vsub.f32 %v309, %v325
    %v342 = vsub.f32 %v310, %v326
    %v343 = vsub.f32 %v311, %v327
    %v344 = vsub.f32 %v312, %v328
    %v345 = vsub.f32 %v313, %v329
    %v346 = vsub.f32 %v314, %v330
    %v347 = vmul.f32 %v331, 0.33333334
    %v348 = vmul.f32 %v332, 0.33333334
    %v349 = vmul.f32 %v333, 0.33333334
    %v350 = vmul.f32 %v334, 0.33333334
    %v351 = vmul.f32 %v335, 0.33333334
    %v352 = vmul.f32 %v336, 0.33333334
    %v353 = vmul.f32 %v337, 0.33333334
    %v354 = vmul.f32 %v338, 0.33333334
    %v355 = vmul.f32 %v339, 0.33333334
    %v356 = vmul.f32 %v340, 0.33333334
    %v357 = vmul.f32 %v341, 0.33333334
    %v358 = vmul.f32 %v342, 0.33333334
    %v359 = vmul.f32 %v343, 0.33333334
    %v360 = vmul.f32 %v344, 0.33333334
    %v361 = vmul.f32 %v345, 0.33333334
    %v362 = vmul.f32 %v346, 0.33333334
    %379 = vrot.lane.b32.xlu0 %v267, 64
    %v380 = vpop.permute.xlu0 %379
    %381 = vrot.lane.b32.xlu0 %v268, 64
    %v382 = vpop.permute.xlu0 %381
    %383 = vrot.lane.b32.xlu0 %v269, 64
    %v384 = vpop.permute.xlu0 %383
    %385 = vrot.lane.b32.xlu0 %v270, 64
    %v386 = vpop.permute.xlu0 %385
    %387 = vrot.lane.b32.xlu0 %v271, 64
    %v388 = vpop.permute.xlu0 %387
    %389 = vrot.lane.b32.xlu0 %v272, 64
    %v390 = vpop.permute.xlu0 %389
    %391 = vrot.lane.b32.xlu0 %v273, 64
    %v392 = vpop.permute.xlu0 %391
    %393 = vrot.lane.b32.xlu0 %v274, 64
    %v394 = vpop.permute.xlu0 %393
    %395 = vrot.lane.b32.xlu0 %v275, 64
    %v396 = vpop.permute.xlu0 %395
    %397 = vrot.lane.b32.xlu0 %v276, 64
    %v398 = vpop.permute.xlu0 %397
    %399 = vrot.lane.b32.xlu0 %v277, 64
    %v400 = vpop.permute.xlu0 %399
    %401 = vrot.lane.b32.xlu0 %v278, 64
    %v402 = vpop.permute.xlu0 %401
    %403 = vrot.lane.b32.xlu0 %v279, 64
    %v404 = vpop.permute.xlu0 %403
    %405 = vrot.lane.b32.xlu0 %v280, 64
    %v406 = vpop.permute.xlu0 %405
    %407 = vrot.lane.b32.xlu0 %v281, 64
    %v408 = vpop.permute.xlu0 %407
    %409 = vrot.lane.b32.xlu0 %v282, 64
    %v410 = vpop.permute.xlu0 %409
    %vm427 = vcmask 523264
    %v428 = vsel %vm427, %v153, 1.0
    %v429 = vsel %vm427, %v154, 1.0
    %v430 = vsel %vm427, %v155, 1.0
    %v431 = vsel %vm427, %v156, 1.0
    %v432 = vsel %vm427, %v157, 1.0
    %v433 = vsel %vm427, %v158, 1.0
    %v434 = vsel %vm427, %v159, 1.0
    %v435 = vsel %vm427, %v160, 1.0
    %v436 = vsel %vm427, %v161, 1.0
    %v437 = vsel %vm427, %v162, 1.0
    %v438 = vsel %vm427, %v163, 1.0
    %v439 = vsel %vm427, %v164, 1.0
    %v440 = vsel %vm427, %v165, 1.0
    %v441 = vsel %vm427, %v166, 1.0
    %v442 = vsel %vm427, %v167, 1.0
    %v443 = vsel %vm427, %v168, 1.0
    %v444 = vsel %vm427, %v203, %v380
    %v445 = vsel %vm427, %v204, %v382
    %v446 = vsel %vm427, %v205, %v384
    %v447 = vsel %vm427, %v206, %v386
    %v448 = vsel %vm427, %v207, %v388
    %v449 = vsel %vm427, %v208, %v390
    %v450 = vsel %vm427, %v209, %v392
    %v451 = vsel %vm427, %v210, %v394
    %v452 = vsel %vm427, %v211, %v396
    %v453 = vsel %vm427, %v212, %v398
    %v454 = vsel %vm427, %v213, %v400
    %v455 = vsel %vm427, %v214, %v402
    %v456 = vsel %vm427, %v215, %v404
    %v457 = vsel %vm427, %v216, %v406
    %v458 = vsel %vm427, %v217, %v408
    %v459 = vsel %vm427, %v218, %v410
    %v460 = vsel %vm427, %v347, 0.0
    %v461 = vsel %vm427, %v348, 0.0
    %v462 = vsel %vm427, %v349, 0.0
    %v463 = vsel %vm427, %v350, 0.0
    %v464 = vsel %vm427, %v351, 0.0
    %v465 = vsel %vm427, %v352, 0.0
    %v466 = vsel %vm427, %v353, 0.0
    %v467 = vsel %vm427, %v354, 0.0
    %v468 = vsel %vm427, %v355, 0.0
    %v469 = vsel %vm427, %v356, 0.0
    %v470 = vsel %vm427, %v357, 0.0
    %v471 = vsel %vm427, %v358, 0.0
    %v472 = vsel %vm427, %v359, 0.0
    %v473 = vsel %vm427, %v360, 0.0
    %v474 = vsel %vm427, %v361, 0.0
    %v475 = vsel %vm427, %v362, 0.0
    %v476 = vpack.c.bf16 %v429, %v428
    %v477 = vpack.c.bf16 %v445, %v444
    %v478 = vpack.c.bf16 %v461, %v460
    %v479 = vpack.c.bf16 %v431, %v430
    %v480 = vpack.c.bf16 %v447, %v446
    %v481 = vpack.c.bf16 %v463, %v462
    %v482 = vpack.c.bf16 %v433, %v432
    %v483 = vpack.c.bf16 %v449, %v448
    %v484 = vpack.c.bf16 %v465, %v464
    %v485 = vpack.c.bf16 %v435, %v434
    %v486 = vpack.c.bf16 %v451, %v450
    %v487 = vpack.c.bf16 %v467, %v466
    %v488 = vpack.c.bf16 %v437, %v436
    %v489 = vpack.c.bf16 %v453, %v452
    %v490 = vpack.c.bf16 %v469, %v468
    %v491 = vpack.c.bf16 %v439, %v438
    %v492 = vpack.c.bf16 %v455, %v454
    %v493 = vpack.c.bf16 %v471, %v470
    %v494 = vpack.c.bf16 %v441, %v440
    %v495 = vpack.c.bf16 %v457, %v456
    %v496 = vpack.c.bf16 %v473, %v472
    %v497 = vpack.c.bf16 %v443, %v442
    %v498 = vpack.c.bf16 %v459, %v458
    %v499 = vpack.c.bf16 %v475, %v474
    %v500 = vld [vmem:[%s2] sm:$0xf]
    %v501 = vld [vmem:[%s2 + $0x4] sm:$0xf]
    %v502 = vld [vmem:[%s2 + $0x8] sm:$0xf]
    %v503 = vld [vmem:[%s2 + $0xc] sm:$0xf]
    %v504 = vld [vmem:[%s2 + $0x10] sm:$0xf]
    %v505 = vld [vmem:[%s2 + $0x14] sm:$0xf]
    %v506 = vld [vmem:[%s2 + $0x18] sm:$0xf]
    %v507 = vld [vmem:[%s2 + $0x1c] sm:$0xf]
    %v508 = vld [vmem:[%s2 + $0x20] sm:$0xf]
    %v509 = vld [vmem:[%s2 + $0x24] sm:$0xf]
    %v510 = vld [vmem:[%s2 + $0x28] sm:$0xf]
    %v511 = vld [vmem:[%s2 + $0x2c] sm:$0xf]
    %v512 = vld [vmem:[%s2 + $0x30] sm:$0xf]
    %v513 = vld [vmem:[%s2 + $0x34] sm:$0xf]
    %v514 = vld [vmem:[%s2 + $0x38] sm:$0xf]
    %v515 = vld [vmem:[%s2 + $0x3c] sm:$0xf]
    %v516 = vld [vmem:[%s2 + $0x40] sm:$0xf]
    %v517 = vld [vmem:[%s2 + $0x44] sm:$0xf]
    %v518 = vld [vmem:[%s2 + $0x48] sm:$0xf]
    %v519 = vld [vmem:[%s2 + $0x4c] sm:$0xf]
    %v520 = vld [vmem:[%s2 + $0x50] sm:$0xf]
    %v521 = vld [vmem:[%s2 + $0x54] sm:$0xf]
    %v522 = vld [vmem:[%s2 + $0x58] sm:$0xf]
    %v523 = vld [vmem:[%s2 + $0x5c] sm:$0xf]
    %v524 = vld [vmem:[%s2 + $0x60] sm:$0xf]
    %v525 = vld [vmem:[%s2 + $0x64] sm:$0xf]
    %v526 = vld [vmem:[%s2 + $0x68] sm:$0xf]
    %v527 = vld [vmem:[%s2 + $0x6c] sm:$0xf]
    %v528 = vld [vmem:[%s2 + $0x70] sm:$0xf]
    %v529 = vld [vmem:[%s2 + $0x74] sm:$0xf]
    %v530 = vld [vmem:[%s2 + $0x78] sm:$0xf]
    %v531 = vld [vmem:[%s2 + $0x7c] sm:$0xf]
    %v532 = vld [vmem:[%s2 + $0x80] sm:$0xf]
    %v533 = vld [vmem:[%s2 + $0x84] sm:$0xf]
    %v534 = vld [vmem:[%s2 + $0x88] sm:$0xf]
    %v535 = vld [vmem:[%s2 + $0x8c] sm:$0xf]
    %v536 = vld [vmem:[%s2 + $0x90] sm:$0xf]
    %v537 = vld [vmem:[%s2 + $0x94] sm:$0xf]
    %v538 = vld [vmem:[%s2 + $0x98] sm:$0xf]
    %v539 = vld [vmem:[%s2 + $0x9c] sm:$0xf]
    %v540 = vld [vmem:[%s2 + $0xa0] sm:$0xf]
    %v541 = vld [vmem:[%s2 + $0xa4] sm:$0xf]
    %v542 = vld [vmem:[%s2 + $0xa8] sm:$0xf]
    %v543 = vld [vmem:[%s2 + $0xac] sm:$0xf]
    %v544 = vld [vmem:[%s2 + $0xb0] sm:$0xf]
    %v545 = vld [vmem:[%s2 + $0xb4] sm:$0xf]
    %v546 = vld [vmem:[%s2 + $0xb8] sm:$0xf]
    %v547 = vld [vmem:[%s2 + $0xbc] sm:$0xf]
    %v596 = vunpack.c.l.b16 %v500
    %v597 = vunpack.c.l.b16 %v501
    %v598 = vunpack.c.l.b16 %v502
    %v599 = vunpack.c.l.b16 %v503
    %v600 = vunpack.c.l.b16 %v504
    %v601 = vunpack.c.l.b16 %v505
    %v602 = vunpack.c.l.b16 %v506
    %v603 = vunpack.c.l.b16 %v507
    %v604 = vunpack.c.l.b16 %v508
    %v605 = vunpack.c.l.b16 %v509
    %v606 = vunpack.c.l.b16 %v510
    %v607 = vunpack.c.l.b16 %v511
    %v608 = vunpack.c.l.b16 %v512
    %v609 = vunpack.c.l.b16 %v513
    %v610 = vunpack.c.l.b16 %v514
    %v611 = vunpack.c.l.b16 %v515
    %v612 = vunpack.c.l.b16 %v516
    %v613 = vunpack.c.l.b16 %v517
    %v614 = vunpack.c.l.b16 %v518
    %v615 = vunpack.c.l.b16 %v519
    %v616 = vunpack.c.l.b16 %v520
    %v617 = vunpack.c.l.b16 %v521
    %v618 = vunpack.c.l.b16 %v522
    %v619 = vunpack.c.l.b16 %v523
    %v620 = vunpack.c.l.b16 %v524
    %v621 = vunpack.c.l.b16 %v525
    %v622 = vunpack.c.l.b16 %v526
    %v623 = vunpack.c.l.b16 %v527
    %v624 = vunpack.c.l.b16 %v528
    %v625 = vunpack.c.l.b16 %v529
    %v626 = vunpack.c.l.b16 %v530
    %v627 = vunpack.c.l.b16 %v531
    %v628 = vunpack.c.l.b16 %v532
    %v629 = vunpack.c.l.b16 %v533
    %v630 = vunpack.c.l.b16 %v534
    %v631 = vunpack.c.l.b16 %v535
    %v632 = vunpack.c.l.b16 %v536
    %v633 = vunpack.c.l.b16 %v537
    %v634 = vunpack.c.l.b16 %v538
    %v635 = vunpack.c.l.b16 %v539
    %v636 = vunpack.c.l.b16 %v540
    %v637 = vunpack.c.l.b16 %v541
    %v638 = vunpack.c.l.b16 %v542
    %v639 = vunpack.c.l.b16 %v543
    %v640 = vunpack.c.l.b16 %v544
    %v641 = vunpack.c.l.b16 %v545
    %v642 = vunpack.c.l.b16 %v546
    %v643 = vunpack.c.l.b16 %v547
    %v644 = vpack.c.b16 %v597, %v596
    %v645 = vpack.c.b16 %v599, %v598
    %v646 = vpack.c.b16 %v601, %v600
    %v647 = vpack.c.b16 %v603, %v602
    %v648 = vpack.c.b16 %v605, %v604
    %v649 = vpack.c.b16 %v607, %v606
    %v650 = vpack.c.b16 %v609, %v608
    %v651 = vpack.c.b16 %v611, %v610
    %v652 = vpack.c.b16 %v613, %v612
    %v653 = vpack.c.b16 %v615, %v614
    %v654 = vpack.c.b16 %v617, %v616
    %v655 = vpack.c.b16 %v619, %v618
    %v656 = vpack.c.b16 %v621, %v620
    %v657 = vpack.c.b16 %v623, %v622
    %v658 = vpack.c.b16 %v625, %v624
    %v659 = vpack.c.b16 %v627, %v626
    %v660 = vpack.c.b16 %v629, %v628
    %v661 = vpack.c.b16 %v631, %v630
    %v662 = vpack.c.b16 %v633, %v632
    %v663 = vpack.c.b16 %v635, %v634
    %v664 = vpack.c.b16 %v637, %v636
    %v665 = vpack.c.b16 %v639, %v638
    %v666 = vpack.c.b16 %v641, %v640
    %v667 = vpack.c.b16 %v643, %v642
    %692 = vmatprep.subr.bf16.mxu0 0
    %693 = vmatpush1.bf16.msra.mxu0 %v644
    %694 = vmatprep.subr.bf16.mxu0 0
    %695 = vmatpush1.bf16.msra.mxu0 %v645
    %696 = vmatprep.subr.bf16.mxu0 0
    %697 = vmatpush1.bf16.msra.mxu0 %v646
    %698 = vmatprep.subr.bf16.mxu0 0
    %699 = vmatpush1.bf16.msra.mxu0 %v647
    %700 = vmatprep.subr.bf16.mxu0 0
    %701 = vmatpush1.bf16.msra.mxu0 %v648
    %702 = vmatprep.subr.bf16.mxu0 0
    %703 = vmatpush1.bf16.msra.mxu0 %v649
    %704 = vmatprep.subr.bf16.mxu0 0
    %705 = vmatpush1.bf16.msra.mxu0 %v650
    %706 = vmatprep.subr.bf16.mxu0 0
    %707 = vmatpush1.bf16.msra.mxu0 %v651
    %708 = vmatprep.subr.bf16.mxu0 0
    %709 = vmatpush1.bf16.msra.mxu0 %v652
    %710 = vmatprep.subr.bf16.mxu0 0
    %711 = vmatpush1.bf16.msra.mxu0 %v653
    %712 = vmatprep.subr.bf16.mxu0 0
    %713 = vmatpush1.bf16.msra.mxu0 %v654
    %714 = vmatprep.subr.bf16.mxu0 0
    %715 = vmatpush1.bf16.msra.mxu0 %v655
    %716 = vmatprep.subr.bf16.mxu0 0
    %717 = vmatpush1.bf16.msra.mxu0 %v656
    %718 = vmatprep.subr.bf16.mxu0 0
    %719 = vmatpush1.bf16.msra.mxu0 %v657
    %720 = vmatprep.subr.bf16.mxu0 0
    %721 = vmatpush1.bf16.msra.mxu0 %v658
    %722 = vmatprep.subr.bf16.mxu0 0
    %723 = vmatpush1.bf16.msra.mxu0 %v659
    %724 = vmatprep.mubr.bf16.mxu0 %v477
    %725 = vmatmul.mubr.bf16.gmra.mrb[0].mxu0 %v476
    %v726 = vpop.f32.mrb[0].mxu0
    %v727 = vadd.f32 0.0, %v726
    %v728 = vpop.f32.mrb[0].mxu0
    %v729 = vpop.f32.mrb[0].mxu0
    %v730 = vadd.f32 0.0, %v729
    %v731 = vpop.f32.mrb[0].mxu0
    %732 = vmatprep.mubr.bf16.mxu0 %v480
    %733 = vmatmul.mubr.bf16.gmra.mrb[0].mxu0 %v479
    %v734 = vpop.f32.mrb[0].mxu0
    %v735 = vadd.f32 0.0, %v734
    %v736 = vpop.f32.mrb[0].mxu0
    %v737 = vpop.f32.mrb[0].mxu0
    %v738 = vadd.f32 0.0, %v737
    %v739 = vpop.f32.mrb[0].mxu0
    %740 = vmatprep.mubr.bf16.mxu0 %v483
    %741 = vmatmul.mubr.bf16.gmra.mrb[0].mxu0 %v482
    %v742 = vpop.f32.mrb[0].mxu0
    %v743 = vadd.f32 0.0, %v742
    %v744 = vpop.f32.mrb[0].mxu0
    %v745 = vpop.f32.mrb[0].mxu0
    %v746 = vadd.f32 0.0, %v745
    %v747 = vpop.f32.mrb[0].mxu0
    %748 = vmatprep.mubr.bf16.mxu0 %v486
    %749 = vmatmul.mubr.bf16.gmra.mrb[0].mxu0 %v485
    %v750 = vpop.f32.mrb[0].mxu0
    %v751 = vadd.f32 0.0, %v750
    %v752 = vpop.f32.mrb[0].mxu0
    %v753 = vpop.f32.mrb[0].mxu0
    %v754 = vadd.f32 0.0, %v753
    %v755 = vpop.f32.mrb[0].mxu0
    %756 = vmatprep.mubr.bf16.mxu0 %v489
    %757 = vmatmul.mubr.bf16.gmra.mrb[0].mxu0 %v488
    %v758 = vpop.f32.mrb[0].mxu0
    %v759 = vadd.f32 0.0, %v758
    %v760 = vpop.f32.mrb[0].mxu0
    %v761 = vpop.f32.mrb[0].mxu0
    %v762 = vadd.f32 0.0, %v761
    %v763 = vpop.f32.mrb[0].mxu0
    %764 = vmatprep.mubr.bf16.mxu0 %v492
    %765 = vmatmul.mubr.bf16.gmra.mrb[0].mxu0 %v491
    %v766 = vpop.f32.mrb[0].mxu0
    %v767 = vadd.f32 0.0, %v766
    %v768 = vpop.f32.mrb[0].mxu0
    %v769 = vpop.f32.mrb[0].mxu0
    %v770 = vadd.f32 0.0, %v769
    %v771 = vpop.f32.mrb[0].mxu0
    %772 = vmatprep.mubr.bf16.mxu0 %v495
    %773 = vmatmul.mubr.bf16.gmra.mrb[0].mxu0 %v494
    %v774 = vpop.f32.mrb[0].mxu0
    %v775 = vadd.f32 0.0, %v774
    %v776 = vpop.f32.mrb[0].mxu0
    %v777 = vpop.f32.mrb[0].mxu0
    %v778 = vadd.f32 0.0, %v777
    %v779 = vpop.f32.mrb[0].mxu0
    %780 = vmatprep.mubr.bf16.mxu0 %v498
    %781 = vmatmul.mubr.bf16.gmra.mrb[0].mxu0 %v497
    %v782 = vpop.f32.mrb[0].mxu0
    %v783 = vadd.f32 0.0, %v782
    %v784 = vpop.f32.mrb[0].mxu0
    %v785 = vpop.f32.mrb[0].mxu0
    %v786 = vadd.f32 0.0, %v785
    %v787 = vpop.f32.mrb[0].mxu0
    %788 = vdwg.mxu0
    %789 = vmatprep.subr.bf16.mxu0 0
    %790 = vmatpush1.bf16.msra.mxu0 %v660
    %791 = vmatprep.subr.bf16.mxu0 0
    %792 = vmatpush1.bf16.msra.mxu0 %v661
    %793 = vmatprep.subr.bf16.mxu0 0
    %794 = vmatpush1.bf16.msra.mxu0 %v662
    %795 = vmatprep.subr.bf16.mxu0 0
    %796 = vmatpush1.bf16.msra.mxu0 %v663
    %797 = vmatprep.subr.bf16.mxu0 0
    %798 = vmatpush1.bf16.msra.mxu0 %v664
    %799 = vmatprep.subr.bf16.mxu0 0
    %800 = vmatpush1.bf16.msra.mxu0 %v665
    %801 = vmatprep.subr.bf16.mxu0 0
    %802 = vmatpush1.bf16.msra.mxu0 %v666
    %803 = vmatprep.subr.bf16.mxu0 0
    %804 = vmatpush1.bf16.msra.mxu0 %v667
    %805 = vmatprep.subr.bf16.mxu0 0
    %806 = vmatpush1.bf16.msra.mxu0 0
    %807 = vmatprep.subr.bf16.mxu0 0
    %808 = vmatpush1.bf16.msra.mxu0 0
    %809 = vmatprep.subr.bf16.mxu0 0
    %810 = vmatpush1.bf16.msra.mxu0 0
    %811 = vmatprep.subr.bf16.mxu0 0
    %812 = vmatpush1.bf16.msra.mxu0 0
    %813 = vmatprep.subr.bf16.mxu0 0
    %814 = vmatpush1.bf16.msra.mxu0 0
    %815 = vmatprep.subr.bf16.mxu0 0
    %816 = vmatpush1.bf16.msra.mxu0 0
    %817 = vmatprep.subr.bf16.mxu0 0
    %818 = vmatpush1.bf16.msra.mxu0 0
    %819 = vmatprep.subr.bf16.mxu0 0
    %820 = vmatpush1.bf16.msra.mxu0 0
    %821 = vmatprep.mubr.bf16.mxu0 0
    %822 = vmatmul.mubr.bf16.gmra.mrb[0].mxu0 %v478
    %v823 = vpop.f32.mrb[0].mxu0
    %v824 = vadd.f32 %v727, %v823
    %v825 = vpop.f32.mrb[0].mxu0
    %v826 = vpop.f32.mrb[0].mxu0
    %v827 = vadd.f32 %v730, %v826
    %v828 = vpop.f32.mrb[0].mxu0
    %829 = vmatprep.mubr.bf16.mxu0 0
    %830 = vmatmul.mubr.bf16.gmra.mrb[0].mxu0 %v481
    %v831 = vpop.f32.mrb[0].mxu0
    %v832 = vadd.f32 %v735, %v831
    %v833 = vpop.f32.mrb[0].mxu0
    %v834 = vpop.f32.mrb[0].mxu0
    %v835 = vadd.f32 %v738, %v834
    %v836 = vpop.f32.mrb[0].mxu0
    %837 = vmatprep.mubr.bf16.mxu0 0
    %838 = vmatmul.mubr.bf16.gmra.mrb[0].mxu0 %v484
    %v839 = vpop.f32.mrb[0].mxu0
    %v840 = vadd.f32 %v743, %v839
    %v841 = vpop.f32.mrb[0].mxu0
    %v842 = vpop.f32.mrb[0].mxu0
    %v843 = vadd.f32 %v746, %v842
    %v844 = vpop.f32.mrb[0].mxu0
    %845 = vmatprep.mubr.bf16.mxu0 0
    %846 = vmatmul.mubr.bf16.gmra.mrb[0].mxu0 %v487
    %v847 = vpop.f32.mrb[0].mxu0
    %v848 = vadd.f32 %v751, %v847
    %v849 = vpop.f32.mrb[0].mxu0
    %v850 = vpop.f32.mrb[0].mxu0
    %v851 = vadd.f32 %v754, %v850
    %v852 = vpop.f32.mrb[0].mxu0
    %853 = vmatprep.mubr.bf16.mxu0 0
    %854 = vmatmul.mubr.bf16.gmra.mrb[0].mxu0 %v490
    %v855 = vpop.f32.mrb[0].mxu0
    %v856 = vadd.f32 %v759, %v855
    %v857 = vpop.f32.mrb[0].mxu0
    %v858 = vpop.f32.mrb[0].mxu0
    %v859 = vadd.f32 %v762, %v858
    %v860 = vpop.f32.mrb[0].mxu0
    %861 = vmatprep.mubr.bf16.mxu0 0
    %862 = vmatmul.mubr.bf16.gmra.mrb[0].mxu0 %v493
    %v863 = vpop.f32.mrb[0].mxu0
    %v864 = vadd.f32 %v767, %v863
    %v865 = vpop.f32.mrb[0].mxu0
    %v866 = vpop.f32.mrb[0].mxu0
    %v867 = vadd.f32 %v770, %v866
    %v868 = vpop.f32.mrb[0].mxu0
    %869 = vmatprep.mubr.bf16.mxu0 0
    %870 = vmatmul.mubr.bf16.gmra.mrb[0].mxu0 %v496
    %v871 = vpop.f32.mrb[0].mxu0
    %v872 = vadd.f32 %v775, %v871
    %v873 = vpop.f32.mrb[0].mxu0
    %v874 = vpop.f32.mrb[0].mxu0
    %v875 = vadd.f32 %v778, %v874
    %v876 = vpop.f32.mrb[0].mxu0
    %877 = vmatprep.mubr.bf16.mxu0 0
    %878 = vmatmul.mubr.bf16.gmra.mrb[0].mxu0 %v499
    %v879 = vpop.f32.mrb[0].mxu0
    %v880 = vadd.f32 %v783, %v879
    %v881 = vpop.f32.mrb[0].mxu0
    %v882 = vpop.f32.mrb[0].mxu0
    %v883 = vadd.f32 %v786, %v882
    %v884 = vpop.f32.mrb[0].mxu0
    %885 = vdwg.mxu0
    %886 = vadd.xlane.f32.xlu0 %v824
    %v887 = vpop.xlane.xlu0 %886
    %888 = vadd.xlane.f32.xlu0 %v827
    %v889 = vpop.xlane.xlu0 %888
    %890 = vadd.xlane.f32.xlu0 %v832
    %v891 = vpop.xlane.xlu0 %890
    %892 = vadd.xlane.f32.xlu0 %v835
    %v893 = vpop.xlane.xlu0 %892
    %894 = vadd.xlane.f32.xlu0 %v840
    %v895 = vpop.xlane.xlu0 %894
    %896 = vadd.xlane.f32.xlu0 %v843
    %v897 = vpop.xlane.xlu0 %896
    %898 = vadd.xlane.f32.xlu0 %v848
    %v899 = vpop.xlane.xlu0 %898
    %900 = vadd.xlane.f32.xlu0 %v851
    %v901 = vpop.xlane.xlu0 %900
    %902 = vadd.xlane.f32.xlu0 %v856
    %v903 = vpop.xlane.xlu0 %902
    %904 = vadd.xlane.f32.xlu0 %v859
    %v905 = vpop.xlane.xlu0 %904
    %906 = vadd.xlane.f32.xlu0 %v864
    %v907 = vpop.xlane.xlu0 %906
    %908 = vadd.xlane.f32.xlu0 %v867
    %v909 = vpop.xlane.xlu0 %908
    %910 = vadd.xlane.f32.xlu0 %v872
    %v911 = vpop.xlane.xlu0 %910
    %912 = vadd.xlane.f32.xlu0 %v875
    %v913 = vpop.xlane.xlu0 %912
    %914 = vadd.xlane.f32.xlu0 %v880
    %v915 = vpop.xlane.xlu0 %914
    %916 = vadd.xlane.f32.xlu0 %v883
    %v917 = vpop.xlane.xlu0 %916
    %v918 = vmul.f32 %v887, 0.0625
    %v919 = vmul.f32 %v889, 0.0625
    %v920 = vmul.f32 %v891, 0.0625
    %v921 = vmul.f32 %v893, 0.0625
    %v922 = vmul.f32 %v895, 0.0625
    %v923 = vmul.f32 %v897, 0.0625
    %v924 = vmul.f32 %v899, 0.0625
    %v925 = vmul.f32 %v901, 0.0625
    %v926 = vmul.f32 %v903, 0.0625
    %v927 = vmul.f32 %v905, 0.0625
    %v928 = vmul.f32 %v907, 0.0625
    %v929 = vmul.f32 %v909, 0.0625
    %v930 = vmul.f32 %v911, 0.0625
    %v931 = vmul.f32 %v913, 0.0625
    %v932 = vmul.f32 %v915, 0.0625
    %v933 = vmul.f32 %v917, 0.0625
    %v934 = vsub.f32 %v824, %v918
    %v935 = vsub.f32 %v827, %v919
    %v936 = vsub.f32 %v832, %v920
    %v937 = vsub.f32 %v835, %v921
    %v938 = vsub.f32 %v840, %v922
    %v939 = vsub.f32 %v843, %v923
    %v940 = vsub.f32 %v848, %v924
    %v941 = vsub.f32 %v851, %v925
    %v942 = vsub.f32 %v856, %v926
    %v943 = vsub.f32 %v859, %v927
    %v944 = vsub.f32 %v864, %v928
    %v945 = vsub.f32 %v867, %v929
    %v946 = vsub.f32 %v872, %v930
    %v947 = vsub.f32 %v875, %v931
    %v948 = vsub.f32 %v880, %v932
    %v949 = vsub.f32 %v883, %v933
    %v950 = vmul.f32 %v934, %v934
    %v951 = vmul.f32 %v935, %v935
    %v952 = vmul.f32 %v936, %v936
    %v953 = vmul.f32 %v937, %v937
    %v954 = vmul.f32 %v938, %v938
    %v955 = vmul.f32 %v939, %v939
    %v956 = vmul.f32 %v940, %v940
    %v957 = vmul.f32 %v941, %v941
    %v958 = vmul.f32 %v942, %v942
    %v959 = vmul.f32 %v943, %v943
    %v960 = vmul.f32 %v944, %v944
    %v961 = vmul.f32 %v945, %v945
    %v962 = vmul.f32 %v946, %v946
    %v963 = vmul.f32 %v947, %v947
    %v964 = vmul.f32 %v948, %v948
    %v965 = vmul.f32 %v949, %v949
    %966 = vadd.xlane.f32.xlu0 %v950
    %v967 = vpop.xlane.xlu0 %966
    %968 = vadd.xlane.f32.xlu0 %v951
    %v969 = vpop.xlane.xlu0 %968
    %970 = vadd.xlane.f32.xlu0 %v952
    %v971 = vpop.xlane.xlu0 %970
    %972 = vadd.xlane.f32.xlu0 %v953
    %v973 = vpop.xlane.xlu0 %972
    %974 = vadd.xlane.f32.xlu0 %v954
    %v975 = vpop.xlane.xlu0 %974
    %976 = vadd.xlane.f32.xlu0 %v955
    %v977 = vpop.xlane.xlu0 %976
    %978 = vadd.xlane.f32.xlu0 %v956
    %v979 = vpop.xlane.xlu0 %978
    %980 = vadd.xlane.f32.xlu0 %v957
    %v981 = vpop.xlane.xlu0 %980
    %982 = vadd.xlane.f32.xlu0 %v958
    %v983 = vpop.xlane.xlu0 %982
    %984 = vadd.xlane.f32.xlu0 %v959
    %v985 = vpop.xlane.xlu0 %984
    %986 = vadd.xlane.f32.xlu0 %v960
    %v987 = vpop.xlane.xlu0 %986
    %988 = vadd.xlane.f32.xlu0 %v961
    %v989 = vpop.xlane.xlu0 %988
    %990 = vadd.xlane.f32.xlu0 %v962
    %v991 = vpop.xlane.xlu0 %990
    %992 = vadd.xlane.f32.xlu0 %v963
    %v993 = vpop.xlane.xlu0 %992
    %994 = vadd.xlane.f32.xlu0 %v964
    %v995 = vpop.xlane.xlu0 %994
    %996 = vadd.xlane.f32.xlu0 %v965
    %v997 = vpop.xlane.xlu0 %996
    %v998 = vmul.f32 %v918, %v918
    %v999 = vmul.f32 %v919, %v919
    %v1000 = vmul.f32 %v920, %v920
    %v1001 = vmul.f32 %v921, %v921
    %v1002 = vmul.f32 %v922, %v922
    %v1003 = vmul.f32 %v923, %v923
    %v1004 = vmul.f32 %v924, %v924
    %v1005 = vmul.f32 %v925, %v925
    %v1006 = vmul.f32 %v926, %v926
    %v1007 = vmul.f32 %v927, %v927
    %v1008 = vmul.f32 %v928, %v928
    %v1009 = vmul.f32 %v929, %v929
    %v1010 = vmul.f32 %v930, %v930
    %v1011 = vmul.f32 %v931, %v931
    %v1012 = vmul.f32 %v932, %v932
    %v1013 = vmul.f32 %v933, %v933
    %v1014 = vmul.f32 %v998, 112.0
    %v1015 = vmul.f32 %v999, 112.0
    %v1016 = vmul.f32 %v1000, 112.0
    %v1017 = vmul.f32 %v1001, 112.0
    %v1018 = vmul.f32 %v1002, 112.0
    %v1019 = vmul.f32 %v1003, 112.0
    %v1020 = vmul.f32 %v1004, 112.0
    %v1021 = vmul.f32 %v1005, 112.0
    %v1022 = vmul.f32 %v1006, 112.0
    %v1023 = vmul.f32 %v1007, 112.0
    %v1024 = vmul.f32 %v1008, 112.0
    %v1025 = vmul.f32 %v1009, 112.0
    %v1026 = vmul.f32 %v1010, 112.0
    %v1027 = vmul.f32 %v1011, 112.0
    %v1028 = vmul.f32 %v1012, 112.0
    %v1029 = vmul.f32 %v1013, 112.0
    %v1030 = vsub.f32 %v967, %v1014
    %v1031 = vsub.f32 %v969, %v1015
    %v1032 = vsub.f32 %v971, %v1016
    %v1033 = vsub.f32 %v973, %v1017
    %v1034 = vsub.f32 %v975, %v1018
    %v1035 = vsub.f32 %v977, %v1019
    %v1036 = vsub.f32 %v979, %v1020
    %v1037 = vsub.f32 %v981, %v1021
    %v1038 = vsub.f32 %v983, %v1022
    %v1039 = vsub.f32 %v985, %v1023
    %v1040 = vsub.f32 %v987, %v1024
    %v1041 = vsub.f32 %v989, %v1025
    %v1042 = vsub.f32 %v991, %v1026
    %v1043 = vsub.f32 %v993, %v1027
    %v1044 = vsub.f32 %v995, %v1028
    %v1045 = vsub.f32 %v997, %v1029
    %v1046 = vmul.f32 %v1030, 0.0625
    %v1047 = vmul.f32 %v1031, 0.0625
    %v1048 = vmul.f32 %v1032, 0.0625
    %v1049 = vmul.f32 %v1033, 0.0625
    %v1050 = vmul.f32 %v1034, 0.0625
    %v1051 = vmul.f32 %v1035, 0.0625
    %v1052 = vmul.f32 %v1036, 0.0625
    %v1053 = vmul.f32 %v1037, 0.0625
    %v1054 = vmul.f32 %v1038, 0.0625
    %v1055 = vmul.f32 %v1039, 0.0625
    %v1056 = vmul.f32 %v1040, 0.0625
    %v1057 = vmul.f32 %v1041, 0.0625
    %v1058 = vmul.f32 %v1042, 0.0625
    %v1059 = vmul.f32 %v1043, 0.0625
    %v1060 = vmul.f32 %v1044, 0.0625
    %v1061 = vmul.f32 %v1045, 0.0625
    %v1062 = vadd.f32 %v1046, 1e-05
    %v1063 = vadd.f32 %v1047, 1e-05
    %v1064 = vadd.f32 %v1048, 1e-05
    %v1065 = vadd.f32 %v1049, 1e-05
    %v1066 = vadd.f32 %v1050, 1e-05
    %v1067 = vadd.f32 %v1051, 1e-05
    %v1068 = vadd.f32 %v1052, 1e-05
    %v1069 = vadd.f32 %v1053, 1e-05
    %v1070 = vadd.f32 %v1054, 1e-05
    %v1071 = vadd.f32 %v1055, 1e-05
    %v1072 = vadd.f32 %v1056, 1e-05
    %v1073 = vadd.f32 %v1057, 1e-05
    %v1074 = vadd.f32 %v1058, 1e-05
    %v1075 = vadd.f32 %v1059, 1e-05
    %v1076 = vadd.f32 %v1060, 1e-05
    %v1077 = vadd.f32 %v1061, 1e-05
    %v1078 = vrsqrt.pop %v1062
    %v1079 = vrsqrt.pop %v1063
    %v1080 = vrsqrt.pop %v1064
    %v1081 = vrsqrt.pop %v1065
    %v1082 = vrsqrt.pop %v1066
    %v1083 = vrsqrt.pop %v1067
    %v1084 = vrsqrt.pop %v1068
    %v1085 = vrsqrt.pop %v1069
    %v1086 = vrsqrt.pop %v1070
    %v1087 = vrsqrt.pop %v1071
    %v1088 = vrsqrt.pop %v1072
    %v1089 = vrsqrt.pop %v1073
    %v1090 = vrsqrt.pop %v1074
    %v1091 = vrsqrt.pop %v1075
    %v1092 = vrsqrt.pop %v1076
    %v1093 = vrsqrt.pop %v1077
    %v1094 = vmul.f32 %v934, %v1078
    %v1095 = vmul.f32 %v935, %v1079
    %v1096 = vmul.f32 %v936, %v1080
    %v1097 = vmul.f32 %v937, %v1081
    %v1098 = vmul.f32 %v938, %v1082
    %v1099 = vmul.f32 %v939, %v1083
    %v1100 = vmul.f32 %v940, %v1084
    %v1101 = vmul.f32 %v941, %v1085
    %v1102 = vmul.f32 %v942, %v1086
    %v1103 = vmul.f32 %v943, %v1087
    %v1104 = vmul.f32 %v944, %v1088
    %v1105 = vmul.f32 %v945, %v1089
    %v1106 = vmul.f32 %v946, %v1090
    %v1107 = vmul.f32 %v947, %v1091
    %v1108 = vmul.f32 %v948, %v1092
    %v1109 = vmul.f32 %v949, %v1093
    %v1110 = vld [vmem:[%s3] sm:$0x1]
    %v1112 = vlaneseq
    %v1113 = vshrl.u32 %v1112, 7
    %v1114 = vsub.s32 0, %v1113
    %v1115 = vrot.slane %v1110, %v1114
    %v1117 = vmul.f32 %v1094, %v1115
    %v1118 = vmul.f32 %v1095, %v1115
    %v1119 = vmul.f32 %v1096, %v1115
    %v1120 = vmul.f32 %v1097, %v1115
    %v1121 = vmul.f32 %v1098, %v1115
    %v1122 = vmul.f32 %v1099, %v1115
    %v1123 = vmul.f32 %v1100, %v1115
    %v1124 = vmul.f32 %v1101, %v1115
    %v1125 = vmul.f32 %v1102, %v1115
    %v1126 = vmul.f32 %v1103, %v1115
    %v1127 = vmul.f32 %v1104, %v1115
    %v1128 = vmul.f32 %v1105, %v1115
    %v1129 = vmul.f32 %v1106, %v1115
    %v1130 = vmul.f32 %v1107, %v1115
    %v1131 = vmul.f32 %v1108, %v1115
    %v1132 = vmul.f32 %v1109, %v1115
    %v1133 = vld [vmem:[%s4] sm:$0x1]
    %v1135 = vlaneseq
    %v1136 = vshrl.u32 %v1135, 7
    %v1137 = vsub.s32 0, %v1136
    %v1138 = vrot.slane %v1133, %v1137
    %v1140 = vadd.f32 %v1117, %v1138
    %v1141 = vadd.f32 %v1118, %v1138
    %v1142 = vadd.f32 %v1119, %v1138
    %v1143 = vadd.f32 %v1120, %v1138
    %v1144 = vadd.f32 %v1121, %v1138
    %v1145 = vadd.f32 %v1122, %v1138
    %v1146 = vadd.f32 %v1123, %v1138
    %v1147 = vadd.f32 %v1124, %v1138
    %v1148 = vadd.f32 %v1125, %v1138
    %v1149 = vadd.f32 %v1126, %v1138
    %v1150 = vadd.f32 %v1127, %v1138
    %v1151 = vadd.f32 %v1128, %v1138
    %v1152 = vadd.f32 %v1129, %v1138
    %v1153 = vadd.f32 %v1130, %v1138
    %v1154 = vadd.f32 %v1131, %v1138
    %v1155 = vadd.f32 %v1132, %v1138
    %v1156 = vxor.u32 %v1140, 2147483648
    %v1157 = vxor.u32 %v1141, 2147483648
    %v1158 = vxor.u32 %v1142, 2147483648
    %v1159 = vxor.u32 %v1143, 2147483648
    %v1160 = vxor.u32 %v1144, 2147483648
    %v1161 = vxor.u32 %v1145, 2147483648
    %v1162 = vxor.u32 %v1146, 2147483648
    %v1163 = vxor.u32 %v1147, 2147483648
    %v1164 = vxor.u32 %v1148, 2147483648
    %v1165 = vxor.u32 %v1149, 2147483648
    %v1166 = vxor.u32 %v1150, 2147483648
    %v1167 = vxor.u32 %v1151, 2147483648
    %v1168 = vxor.u32 %v1152, 2147483648
    %v1169 = vxor.u32 %v1153, 2147483648
    %v1170 = vxor.u32 %v1154, 2147483648
    %v1171 = vxor.u32 %v1155, 2147483648
    %v1172 = vmul.f32 %v1156, 1.442695
    %v1173 = vpow.pop %v1172
    %v1174 = vmul.f32 %v1157, 1.442695
    %v1175 = vpow.pop %v1174
    %v1176 = vmul.f32 %v1158, 1.442695
    %v1177 = vpow.pop %v1176
    %v1178 = vmul.f32 %v1159, 1.442695
    %v1179 = vpow.pop %v1178
    %v1180 = vmul.f32 %v1160, 1.442695
    %v1181 = vpow.pop %v1180
    %v1182 = vmul.f32 %v1161, 1.442695
    %v1183 = vpow.pop %v1182
    %v1184 = vmul.f32 %v1162, 1.442695
    %v1185 = vpow.pop %v1184
    %v1186 = vmul.f32 %v1163, 1.442695
    %v1187 = vpow.pop %v1186
    %v1188 = vmul.f32 %v1164, 1.442695
    %v1189 = vpow.pop %v1188
    %v1190 = vmul.f32 %v1165, 1.442695
    %v1191 = vpow.pop %v1190
    %v1192 = vmul.f32 %v1166, 1.442695
    %v1193 = vpow.pop %v1192
    %v1194 = vmul.f32 %v1167, 1.442695
    %v1195 = vpow.pop %v1194
    %v1196 = vmul.f32 %v1168, 1.442695
    %v1197 = vpow.pop %v1196
    %v1198 = vmul.f32 %v1169, 1.442695
    %v1199 = vpow.pop %v1198
    %v1200 = vmul.f32 %v1170, 1.442695
    %v1201 = vpow.pop %v1200
    %v1202 = vmul.f32 %v1171, 1.442695
    %v1203 = vpow.pop %v1202
    %v1204 = vadd.f32 %v1173, 1.0
    %v1205 = vadd.f32 %v1175, 1.0
    %v1206 = vadd.f32 %v1177, 1.0
    %v1207 = vadd.f32 %v1179, 1.0
    %v1208 = vadd.f32 %v1181, 1.0
    %v1209 = vadd.f32 %v1183, 1.0
    %v1210 = vadd.f32 %v1185, 1.0
    %v1211 = vadd.f32 %v1187, 1.0
    %v1212 = vadd.f32 %v1189, 1.0
    %v1213 = vadd.f32 %v1191, 1.0
    %v1214 = vadd.f32 %v1193, 1.0
    %v1215 = vadd.f32 %v1195, 1.0
    %v1216 = vadd.f32 %v1197, 1.0
    %v1217 = vadd.f32 %v1199, 1.0
    %v1218 = vadd.f32 %v1201, 1.0
    %v1219 = vadd.f32 %v1203, 1.0
    %v1220 = vrcp.pop %v1204
    %v1221 = vmul.f32 1.0, %v1220
    %v1222 = vrcp.pop %v1205
    %v1223 = vmul.f32 1.0, %v1222
    %v1224 = vrcp.pop %v1206
    %v1225 = vmul.f32 1.0, %v1224
    %v1226 = vrcp.pop %v1207
    %v1227 = vmul.f32 1.0, %v1226
    %v1228 = vrcp.pop %v1208
    %v1229 = vmul.f32 1.0, %v1228
    %v1230 = vrcp.pop %v1209
    %v1231 = vmul.f32 1.0, %v1230
    %v1232 = vrcp.pop %v1210
    %v1233 = vmul.f32 1.0, %v1232
    %v1234 = vrcp.pop %v1211
    %v1235 = vmul.f32 1.0, %v1234
    %v1236 = vrcp.pop %v1212
    %v1237 = vmul.f32 1.0, %v1236
    %v1238 = vrcp.pop %v1213
    %v1239 = vmul.f32 1.0, %v1238
    %v1240 = vrcp.pop %v1214
    %v1241 = vmul.f32 1.0, %v1240
    %v1242 = vrcp.pop %v1215
    %v1243 = vmul.f32 1.0, %v1242
    %v1244 = vrcp.pop %v1216
    %v1245 = vmul.f32 1.0, %v1244
    %v1246 = vrcp.pop %v1217
    %v1247 = vmul.f32 1.0, %v1246
    %v1248 = vrcp.pop %v1218
    %v1249 = vmul.f32 1.0, %v1248
    %v1250 = vrcp.pop %v1219
    %v1251 = vmul.f32 1.0, %v1250
    %v1252 = vmul.f32 %v1140, %v1221
    %v1253 = vmul.f32 %v1141, %v1223
    %v1254 = vmul.f32 %v1142, %v1225
    %v1255 = vmul.f32 %v1143, %v1227
    %v1256 = vmul.f32 %v1144, %v1229
    %v1257 = vmul.f32 %v1145, %v1231
    %v1258 = vmul.f32 %v1146, %v1233
    %v1259 = vmul.f32 %v1147, %v1235
    %v1260 = vmul.f32 %v1148, %v1237
    %v1261 = vmul.f32 %v1149, %v1239
    %v1262 = vmul.f32 %v1150, %v1241
    %v1263 = vmul.f32 %v1151, %v1243
    %v1264 = vmul.f32 %v1152, %v1245
    %v1265 = vmul.f32 %v1153, %v1247
    %v1266 = vmul.f32 %v1154, %v1249
    %v1267 = vmul.f32 %v1155, %v1251
    %1268 = vst [vmem:[%s5] sm:$0xff] %v1252
    %1269 = vst [vmem:[%s5 + $0x8] sm:$0xff] %v1253
    %1270 = vst [vmem:[%s5 + $0x10] sm:$0xff] %v1254
    %1271 = vst [vmem:[%s5 + $0x18] sm:$0xff] %v1255
    %1272 = vst [vmem:[%s5 + $0x20] sm:$0xff] %v1256
    %1273 = vst [vmem:[%s5 + $0x28] sm:$0xff] %v1257
    %1274 = vst [vmem:[%s5 + $0x30] sm:$0xff] %v1258
    %1275 = vst [vmem:[%s5 + $0x38] sm:$0xff] %v1259
    %1276 = vst [vmem:[%s5 + $0x40] sm:$0xff] %v1260
    %1277 = vst [vmem:[%s5 + $0x48] sm:$0xff] %v1261
    %1278 = vst [vmem:[%s5 + $0x50] sm:$0xff] %v1262
    %1279 = vst [vmem:[%s5 + $0x58] sm:$0xff] %v1263
    %1280 = vst [vmem:[%s5 + $0x60] sm:$0xff] %v1264
    %1281 = vst [vmem:[%s5 + $0x68] sm:$0xff] %v1265
    %1282 = vst [vmem:[%s5 + $0x70] sm:$0xff] %v1266
    %1283 = vst [vmem:[%s5 + $0x78] sm:$0xff] %v1267
    %v1284 = vlaneseq
    %v1285 = vand.u32 %v1284, 127
    %vm1286 = vcmp.lt.s32.totalorder %v1285, 16
    %v1287 = vsel %vm1286, %v1252, inf
    %v1288 = vsel %vm1286, %v1253, inf
    %v1289 = vsel %vm1286, %v1254, inf
    %v1290 = vsel %vm1286, %v1255, inf
    %v1291 = vsel %vm1286, %v1256, inf
    %v1292 = vsel %vm1286, %v1257, inf
    %v1293 = vsel %vm1286, %v1258, inf
    %v1294 = vsel %vm1286, %v1259, inf
    %v1295 = vsel %vm1286, %v1260, inf
    %v1296 = vsel %vm1286, %v1261, inf
    %v1297 = vsel %vm1286, %v1262, inf
    %v1298 = vsel %vm1286, %v1263, inf
    %v1299 = vsel %vm1286, %v1264, inf
    %v1300 = vsel %vm1286, %v1265, inf
    %v1301 = vsel %vm1286, %v1266, inf
    %v1302 = vsel %vm1286, %v1267, inf
    %v1303 = vmin.f32 %v1287, %v1291
    %v1304 = vmin.f32 %v1288, %v1292
    %v1305 = vmin.f32 %v1289, %v1293
    %v1306 = vmin.f32 %v1290, %v1294
    %v1307 = vmin.f32 %v1303, %v1295
    %v1308 = vmin.f32 %v1304, %v1296
    %v1309 = vmin.f32 %v1305, %v1297
    %v1310 = vmin.f32 %v1306, %v1298
    %v1311 = vmin.f32 %v1307, %v1299
    %v1312 = vmin.f32 %v1308, %v1300
    %v1313 = vmin.f32 %v1309, %v1301
    %v1314 = vmin.f32 %v1310, %v1302
    %v1315 = vmin.f32 %v1311, %v1312
    %v1316 = vmin.f32 %v1313, %v1314
    %v1317 = vmin.f32 %v1315, %v1316
    %1318 = vmin.xlane.f32.xlu0 %v1317
    %v1319 = vpop.xlane.xlu0 %1318
    %v1320 = vrot.slane %v1319, 4
    %v1321 = vmin.f32 %v1319, %v1320
    %v1322 = vrot.slane %v1321, 2
    %v1323 = vmin.f32 %v1321, %v1322
    %v1324 = vrot.slane %v1323, 1
    %v1325 = vmin.f32 %v1323, %v1324
    %s1326 = vtos %v1325
    %v1327 = vsel %vm1286, %v1252, -inf
    %v1328 = vsel %vm1286, %v1253, -inf
    %v1329 = vsel %vm1286, %v1254, -inf
    %v1330 = vsel %vm1286, %v1255, -inf
    %v1331 = vsel %vm1286, %v1256, -inf
    %v1332 = vsel %vm1286, %v1257, -inf
    %v1333 = vsel %vm1286, %v1258, -inf
    %v1334 = vsel %vm1286, %v1259, -inf
    %v1335 = vsel %vm1286, %v1260, -inf
    %v1336 = vsel %vm1286, %v1261, -inf
    %v1337 = vsel %vm1286, %v1262, -inf
    %v1338 = vsel %vm1286, %v1263, -inf
    %v1339 = vsel %vm1286, %v1264, -inf
    %v1340 = vsel %vm1286, %v1265, -inf
    %v1341 = vsel %vm1286, %v1266, -inf
    %v1342 = vsel %vm1286, %v1267, -inf
    %v1343 = vmax.f32 %v1327, %v1331
    %v1344 = vmax.f32 %v1328, %v1332
    %v1345 = vmax.f32 %v1329, %v1333
    %v1346 = vmax.f32 %v1330, %v1334
    %v1347 = vmax.f32 %v1343, %v1335
    %v1348 = vmax.f32 %v1344, %v1336
    %v1349 = vmax.f32 %v1345, %v1337
    %v1350 = vmax.f32 %v1346, %v1338
    %v1351 = vmax.f32 %v1347, %v1339
    %v1352 = vmax.f32 %v1348, %v1340
    %v1353 = vmax.f32 %v1349, %v1341
    %v1354 = vmax.f32 %v1350, %v1342
    %v1355 = vmax.f32 %v1351, %v1352
    %v1356 = vmax.f32 %v1353, %v1354
    %v1357 = vmax.f32 %v1355, %v1356
    %1358 = vmax.xlane.f32.xlu0 %v1357
    %v1359 = vpop.xlane.xlu0 %1358
    %v1360 = vrot.slane %v1359, 4
    %v1361 = vmax.f32 %v1359, %v1360
    %v1362 = vrot.slane %v1361, 2
    %v1363 = vmax.f32 %v1361, %v1362
    %v1364 = vrot.slane %v1363, 1
    %v1365 = vmax.f32 %v1363, %v1364
    %s1366 = vtos %v1365
    %v1367 = vstv %s1326
    %1368 = vst [vmem:[#allocation5] sm:$0xff] %v1367
    %v1369 = vstv %s1366
    %1370 = vst [vmem:[#allocation6] sm:$0xff] %v1369
    // Predicated region
    $region26: #{_lambda_.3} parent=1 // pred_check
      _
    $region27: #{_lambda_.3} parent=1 // pred_check_branch
      %1372 = sbr.rel (0) target = $region29
    $region28: #{_lambda_.3} parent=1 // pred_region
      _
    $region29: #{_lambda_.3} parent=1 // pred_fallthru
      _
    // Predicated region
    $region30: #{_lambda_.3} parent=1 // pred_check
      _
    $region31: #{_lambda_.3} parent=1 // pred_check_branch
      %1374 = sbr.rel (0) target = $region33
    $region32: #{_lambda_.3} parent=1 // pred_region
      %s1376 = ssub.s32 128, 128
      %1377 = vsyncadd [#allocation3], %s1376
      %s1379 = sshll.u32 [#allocation5], 4
      %s1380 = int_to_ptr.vmem [resolvable:$true] %s1379
      %1382 = dma.vmem_to_hbm [thread:$0]  %s1380, 128, %s6, [#allocation3]
    $region33: #{_lambda_.3} parent=1 // pred_fallthru
      _
    // Predicated region
    $region34: #{_lambda_.3} parent=1 // pred_check
      _
    $region35: #{_lambda_.3} parent=1 // pred_check_branch
      %1384 = sbr.rel (0) target = $region37
    $region36: #{_lambda_.3} parent=1 // pred_region
      %s1386 = ssub.s32 128, 128
      %1387 = vsyncadd [#allocation7], %s1386
      %s1389 = sshll.u32 [#allocation6], 4
      %s1390 = int_to_ptr.vmem [resolvable:$true] %s1389
      %1392 = dma.vmem_to_hbm [thread:$0]  %s1390, 128, %s7, [#allocation7]
    $region37: #{_lambda_.3} parent=1 // pred_fallthru
      _
    // Predicated region
    $region38: #{_lambda_.3} parent=1 // pred_check
      _
    $region39: #{_lambda_.3} parent=1 // pred_check_branch
      %1394 = sbr.rel (0) target = $region41
    $region40: #{_lambda_.3} parent=1 // pred_region
      _
    $region41: #{_lambda_.3} parent=1 // pred_fallthru
      _
    // Predicated region
    $region42: #{_lambda_.3} parent=1 // pred_check
      _
    $region43: #{_lambda_.3} parent=1 // pred_check_branch
      %1396 = sbr.rel (0) target = $region45
    $region44: #{_lambda_.3} parent=1 // pred_region
      %1397 = dma.done [#allocation3], 128
    $region45: #{_lambda_.3} parent=1 // pred_fallthru
      _
    // Predicated region
    $region46: #{_lambda_.3} parent=1 // pred_check
      _
    $region47: #{_lambda_.3} parent=1 // pred_check_branch
      %1399 = sbr.rel (0) target = $region49
    $region48: #{_lambda_.3} parent=1 // pred_region
      %1400 = dma.done [#allocation7], 128
    $region49: #{_lambda_.3} parent=1 // pred_fallthru
      _
    %1401 = vsyncpa [#allocation3], 1
    %1402 = vsyncpa [#allocation7], 1
    %1403 = vsyncpa [#allocation4], 1

</llo_original>
